<compile_context>
chip_gen: v7x
topology: tpu7x:2x2x1
jax: 0.10.0
libtpu: 0.0.40
codegen_flags: <defaults>
</compile_context>

<pallas_src>
import math
from functools import partial

import jax
import jax.numpy as jnp
from jax.experimental import pallas as pl
from jax.experimental.pallas import tpu as pltpu

# ----- small BERT-shaped config -----
VOCAB = 100
VOCAB_PAD = 128          # contraction dim of the embedding matmul, tile-aligned
TYPE_VOCAB = 2
MAX_POS = 16
HIDDEN = 32
NUM_HEADS = 2
HEAD_DIM = HIDDEN // NUM_HEADS
INTERMEDIATE = 64
NUM_LAYERS = 2
NUM_LABELS = 2
LN_EPS = 1e-12
ATTN_SCALE = 1.0 / math.sqrt(HEAD_DIM)   # = 0.25 exactly (power of two)

QUANT_SCALE = 32.0 / 2 ** 4   # = 2.0
QUANT_ZP = 16.0
LANES = 128

# ---- weight-slab slice indices (bf16 slab) ----
W_WEMB = 0
W_LAYER = 1                           # 4 slices per layer: wqkv, wo, w1, w2
W_POOL = W_LAYER + 4 * NUM_LAYERS     # 9
W_CLS = W_POOL + 1                    # 10
N_WMATS = W_CLS + 1                   # 11

# ---- vslab: rows [0, M) = position-embedding slab; misc rows start at M ----
# misc-row offsets (relative to M):
V_EMB_LN_G = 0
V_EMB_LN_B = 1
V_TYPE0 = 2
V_TYPE1 = 3
V_LAYER = 4                           # 8 rows per layer:
#   +0 bqkv, +1 bo, +2 aln_g, +3 aln_b, +4 b1, +5 b2, +6 fln_g, +7 fln_b
V_POOL_B = V_LAYER + 8 * NUM_LAYERS   # 20
V_CLS_B = V_POOL_B + 1                # 21
N_VROWS_MISC = V_CLS_B + 1            # 22


def _layernorm(x, g, b):
    mu = jnp.mean(x, axis=-1, keepdims=True)
    var = jnp.mean(jnp.square(x - mu), axis=-1, keepdims=True)
    return (x - mu) * jax.lax.rsqrt(var + LN_EPS) * g + b


def _mm(x, w_bf16):
    # bf16 MXU inputs (weights pre-cast host-side), fp32 accumulation.
    return jnp.dot(x.astype(jnp.bfloat16), w_bf16,
                   preferred_element_type=jnp.float32)


# ---------------- fully fused forward kernel ----------------

def _fused_bert_kernel(xslab_ref, wslab_ref, vslab_ref, out_ref, *, batch, seq):
    f32 = jnp.float32
    bf16 = jnp.bfloat16
    M = batch * seq
    VB = M                       # base row of misc vectors in vslab

    def vec(row, width):
        return vslab_ref[row:row + 1, 0:width]          # (1, width) fp32

    def wmat(idx, rows, cols):
        return wslab_ref[idx, 0:rows, 0:cols]           # (rows, cols) bf16

    # ---------- unpack runtime inputs ----------
    ids = xslab_ref[0:M, 0:1].astype(jnp.int32)                     # (M, 1)
    tt = xslab_ref[0:M, 1:2]                                        # (M, 1)
    amask = xslab_ref[M:M + batch, 0:seq]                           # (B, S)
    labels = xslab_ref[M + batch:M + 2 * batch, 0:1].astype(jnp.int32)  # (B,1)

    # ---------- embeddings ----------
    # word lookup: bf16 one-hot @ bf16 table on the MXU (exact), fp32 acc
    word_oh = (jax.lax.broadcasted_iota(jnp.int32, (M, VOCAB_PAD), 1) == ids
               ).astype(bf16)
    emb = jnp.dot(word_oh, wmat(W_WEMB, VOCAB_PAD, HIDDEN),
                  preferred_element_type=f32)
    emb = emb + vslab_ref[0:M, 0:HIDDEN]                 # precomputed pos slab
    emb = emb + jnp.where(tt == 0.0, vec(VB + V_TYPE0, HIDDEN),
                          vec(VB + V_TYPE1, HIDDEN))     # TYPE_VOCAB == 2
    x = _layernorm(emb, vec(VB + V_EMB_LN_G, HIDDEN), vec(VB + V_EMB_LN_B, HIDDEN))

    # HF-BERT extended additive attention mask: (1 - mask) * -10000   (B, S)
    neg_mask = (1.0 - amask) * -10000.0

    # ---------------------------- encoder layers ----------------------------
    for li in range(NUM_LAYERS):
        wbase = W_LAYER + 4 * li
        vbase = VB + V_LAYER + 8 * li

        # fused Q|K|V projection (ATTN_SCALE pre-folded into the Q columns)
        qkv = _mm(x, wmat(wbase + 0, HIDDEN, 3 * HIDDEN)) + vec(vbase + 0, 3 * HIDDEN)

        head_ctx = []
        for h in range(NUM_HEADS):
            q = qkv[:, h * HEAD_DIM:(h + 1) * HEAD_DIM].reshape(batch, seq, HEAD_DIM)
            k = qkv[:, HIDDEN + h * HEAD_DIM:
                    HIDDEN + (h + 1) * HEAD_DIM].reshape(batch, seq, HEAD_DIM)
            v = qkv[:, 2 * HIDDEN + h * HEAD_DIM:
                    2 * HIDDEN + (h + 1) * HEAD_DIM].reshape(batch, seq, HEAD_DIM)

            # batched over B: one scores matmul + one context matmul per head
            s = jnp.einsum('bqd,bkd->bqk', q.astype(bf16), k.astype(bf16),
                           preferred_element_type=f32)
            s = s + neg_mask[:, None, :]
            s = s - jnp.max(s, axis=-1, keepdims=True)   # stable softmax
            p = jnp.exp(s)
            p = p / jnp.sum(p, axis=-1, keepdims=True)   # exact division
            ctx = jnp.einsum('bqk,bkd->bqd', p.astype(bf16), v.astype(bf16),
                             preferred_element_type=f32)
            head_ctx.append(ctx.reshape(M, HEAD_DIM))
        ctx = jnp.concatenate(head_ctx, axis=1)          # (M, H)

        attn_out = _mm(ctx, wmat(wbase + 1, HIDDEN, HIDDEN)) + vec(vbase + 1, HIDDEN)
        x = _layernorm(attn_out + x, vec(vbase + 2, HIDDEN), vec(vbase + 3, HIDDEN))

        h1 = _mm(x, wmat(wbase + 2, HIDDEN, INTERMEDIATE)) + vec(vbase + 4, INTERMEDIATE)
        # TODO(synk): HF BERT uses exact erf-GELU; tanh approximation used here.
        h1 = jax.nn.gelu(h1, approximate=True)
        ffn_out = _mm(h1, wmat(wbase + 3, INTERMEDIATE, HIDDEN)) + vec(vbase + 5, HIDDEN)
        x = _layernorm(ffn_out + x, vec(vbase + 6, HIDDEN), vec(vbase + 7, HIDDEN))

    # ---------------- pooler + classifier + quant stub + CE -----------------
    cls_x = x.reshape(batch, seq, HIDDEN)[:, 0:1, :].reshape(batch, HIDDEN)  # [CLS]
    pooled = jnp.tanh(_mm(cls_x, wmat(W_POOL, HIDDEN, HIDDEN)) + vec(VB + V_POOL_B, HIDDEN))
    logits = _mm(pooled, wmat(W_CLS, HIDDEN, NUM_LABELS)) + vec(VB + V_CLS_B, NUM_LABELS)

    # myQuantStub.forward applied to the fp32 logits, then cast back to float
    q4 = jnp.clip(jnp.round(logits * (1.0 / QUANT_SCALE)) + QUANT_ZP, -16.0, 15.0)

    # nn.CrossEntropyLoss (mean reduction) on the quantized logits
    mx = jnp.max(q4, axis=-1, keepdims=True)
    z = q4 - mx
    lse = jnp.log(jnp.sum(jnp.exp(z), axis=-1, keepdims=True))
    logprobs = z - lse                                            # (B, C)
    onehot = (jax.lax.broadcasted_iota(jnp.int32, q4.shape, 1) == labels
              ).astype(f32)                                       # (B, C)
    nll = -jnp.sum(logprobs * onehot, axis=-1, keepdims=True)     # (B, 1)
    loss = jnp.sum(nll, axis=0, keepdims=True) * (1.0 / batch)    # (1, 1)

    # single lane-dense output slab: logits in rows 0..B-1, loss at [B, 0]
    out_ref[...] = jnp.zeros(out_ref.shape, f32)
    out_ref[0:batch, 0:NUM_LABELS] = q4
    out_ref[batch:batch + 1, 0:1] = loss


# ---------------- parameters (deterministic, synthetic) ----------------

def init_params(key):
    def dense(k, fan_in, fan_out):
        kw, _ = jax.random.split(k)
        return {"w": jax.random.normal(kw, (fan_in, fan_out), jnp.float32) * 0.02,
                "b": jnp.zeros((fan_out,), jnp.float32)}

    keys = jax.random.split(key, 8 + NUM_LAYERS)
    params = {
        "word_emb": jax.random.normal(keys[0], (VOCAB, HIDDEN), jnp.float32) * 0.02,
        "pos_emb": jax.random.normal(keys[1], (MAX_POS, HIDDEN), jnp.float32) * 0.02,
        "type_emb": jax.random.normal(keys[2], (TYPE_VOCAB, HIDDEN), jnp.float32) * 0.02,
        "emb_ln_g": jnp.ones((HIDDEN,), jnp.float32),
        "emb_ln_b": jnp.zeros((HIDDEN,), jnp.float32),
        "pooler": dense(keys[3], HIDDEN, HIDDEN),
        "classifier": dense(keys[4], HIDDEN, NUM_LABELS),
        "layers": [],
    }
    for li in range(NUM_LAYERS):
        k = jax.random.split(keys[8 + li], 6)
        params["layers"].append({
            "q": dense(k[0], HIDDEN, HIDDEN),
            "k": dense(k[1], HIDDEN, HIDDEN),
            "v": dense(k[2], HIDDEN, HIDDEN),
            "o": dense(k[3], HIDDEN, HIDDEN),
            "attn_ln_g": jnp.ones((HIDDEN,), jnp.float32),
            "attn_ln_b": jnp.zeros((HIDDEN,), jnp.float32),
            "ffn1": dense(k[4], HIDDEN, INTERMEDIATE),
            "ffn2": dense(k[5], INTERMEDIATE, HIDDEN),
            "ffn_ln_g": jnp.ones((HIDDEN,), jnp.float32),
            "ffn_ln_b": jnp.zeros((HIDDEN,), jnp.float32),
        })
    return params


# ---------------- host-side slab packing ----------------

def _pad2(a):
    a = jnp.asarray(a, jnp.float32)
    r, c = a.shape
    return jnp.pad(a, ((0, 128 - r), (0, 128 - c)))


def _padrow(v):
    v = jnp.asarray(v, jnp.float32).reshape(1, -1)
    return jnp.pad(v, ((0, 0), (0, LANES - v.shape[1])))


def _pack_params(params, batch, seq):
    """Pack every weight matrix into one bf16 slab and every vector into one
    fp32 slab (2 input DMAs for all parameters)."""
    wmats = [params["word_emb"]]                                   # W_WEMB
    misc_rows = [params["emb_ln_g"], params["emb_ln_b"],
                 params["type_emb"][0], params["type_emb"][1]]
    for lp in params["layers"]:
        wq = lp["q"]["w"] * ATTN_SCALE                # fold 1/sqrt(d) into Q
        bq = lp["q"]["b"] * ATTN_SCALE
        wqkv = jnp.concatenate([wq, lp["k"]["w"], lp["v"]["w"]], axis=1)
        bqkv = jnp.concatenate([bq, lp["k"]["b"], lp["v"]["b"]], axis=0)
        wmats += [wqkv, lp["o"]["w"], lp["ffn1"]["w"], lp["ffn2"]["w"]]
        misc_rows += [bqkv, lp["o"]["b"], lp["attn_ln_g"], lp["attn_ln_b"],
                      lp["ffn1"]["b"], lp["ffn2"]["b"],
                      lp["ffn_ln_g"], lp["ffn_ln_b"]]
    wmats += [params["pooler"]["w"], params["classifier"]["w"]]
    misc_rows += [params["pooler"]["b"], params["classifier"]["b"]]
    assert len(wmats) == N_WMATS and len(misc_rows) == N_VROWS_MISC

    wslab = jnp.stack([_pad2(w) for w in wmats], axis=0).astype(jnp.bfloat16)

    # positions are static (tile(arange(S))): precompute the (M, HIDDEN) slab
    pos_slab = jnp.tile(params["pos_emb"][:seq], (batch, 1))       # (M, HIDDEN)
    pos_slab = jnp.pad(pos_slab, ((0, 0), (0, LANES - HIDDEN)))
    vslab = jnp.concatenate([pos_slab] + [_padrow(v) for v in misc_rows], axis=0)
    pad = (-vslab.shape[0]) % 8
    if pad:
        vslab = jnp.pad(vslab, ((0, pad), (0, 0)))
    return wslab, vslab


def _pack_inputs(input_ids, attention_mask, token_type_ids, labels, batch, seq):
    """Pack all runtime inputs into one fp32 slab (1 input DMA)."""
    M = batch * seq
    rows = M + 2 * batch
    rows_pad = ((rows + 7) // 8) * 8
    x = jnp.zeros((rows_pad, LANES), jnp.float32)
    x = x.at[0:M, 0].set(input_ids.reshape(M).astype(jnp.float32))
    x = x.at[0:M, 1].set(token_type_ids.reshape(M).astype(jnp.float32))
    x = x.at[M:M + batch, 0:seq].set(attention_mask.astype(jnp.float32))
    x = x.at[M + batch:M + 2 * batch, 0].set(labels.astype(jnp.float32))
    return x


# ---------------- forward pass (one pallas_call, 3 inputs, 1 output) ----------------

def quantized_4bit_bert_forward(params, input_ids, attention_mask=None,
                                token_type_ids=None, labels=None):
    B, S = input_ids.shape
    assert B + 1 <= 8, "loss row must fit in the (8, 128) output slab"
    if attention_mask is None:
        attention_mask = jnp.ones((B, S), jnp.float32)
    if token_type_ids is None:
        token_type_ids = jnp.zeros((B, S), jnp.int32)
    have_labels = labels is not None
    lbl = labels if have_labels else jnp.zeros((B,), jnp.int32)

    wslab, vslab = _pack_params(params, B, S)
    xslab = _pack_inputs(input_ids, attention_mask, token_type_ids, lbl, B, S)

    out = pl.pallas_call(
        partial(_fused_bert_kernel, batch=B, seq=S),
        out_shape=jax.ShapeDtypeStruct((8, LANES), jnp.float32),
        in_specs=[pl.BlockSpec(memory_space=pltpu.MemorySpace.VMEM)] * 3,
        out_specs=pl.BlockSpec(memory_space=pltpu.MemorySpace.VMEM),
    )(xslab, wslab, vslab)

    qlogits = out[0:B, 0:NUM_LABELS]
    loss = out[B, 0]
    return (loss if have_labels else None), qlogits


if __name__ == "__main__":
    key = jax.random.PRNGKey(0)
    pkey, ikey, lkey = jax.random.split(key, 3)
    params = init_params(pkey)

    B, S = 2, 8
    input_ids = jax.random.randint(ikey, (B, S), 0, VOCAB, dtype=jnp.int32)
    attention_mask = jnp.ones((B, S), jnp.float32)
    token_type_ids = jnp.zeros((B, S), jnp.int32)
    labels = jax.random.randint(lkey, (B,), 0, NUM_LABELS, dtype=jnp.int32)

    loss, logits = quantized_4bit_bert_forward(
        params, input_ids, attention_mask, token_type_ids, labels)
    jax.block_until_ready((loss, logits))
    print("KERNEL_OK")
</pallas_src>

<mosaic_0001>
module attributes {stable_mosaic.version = 11 : i64} {
  func.func @_fused_bert_kernel(%arg0: memref<24x128xf32, #tpu.memory_space<vmem>>, %arg1: memref<11x128x128xbf16, #tpu.memory_space<vmem>>, %arg2: memref<40x128xf32, #tpu.memory_space<vmem>>, %arg3: memref<8x128xf32, #tpu.memory_space<vmem>>) attributes {dimension_semantics = [], scalar_prefetch = 0 : i64, scratch_operands = 0 : i64, tpu.core_type = #tpu.core_type<tc>} {
    %c0 = arith.constant 0 : index
    %c0_0 = arith.constant 0 : index
    %0 = vector.load %arg0[%c0, %c0_0] : memref<24x128xf32, #tpu.memory_space<vmem>>, vector<16x1xf32>
    %1 = arith.fptosi %0 : vector<16x1xf32> to vector<16x1xi32>
    %c0_1 = arith.constant 0 : index
    %c1 = arith.constant 1 : index
    %2 = vector.load %arg0[%c0_1, %c1] : memref<24x128xf32, #tpu.memory_space<vmem>>, vector<16x1xf32>
    %c16 = arith.constant 16 : index
    %c0_2 = arith.constant 0 : index
    %3 = vector.load %arg0[%c16, %c0_2] : memref<24x128xf32, #tpu.memory_space<vmem>>, vector<2x8xf32>
    %c18 = arith.constant 18 : index
    %c0_3 = arith.constant 0 : index
    %4 = vector.load %arg0[%c18, %c0_3] : memref<24x128xf32, #tpu.memory_space<vmem>>, vector<2x1xf32>
    %5 = arith.fptosi %4 : vector<2x1xf32> to vector<2x1xi32>
    %6 = tpu.iota {dimensions = array<i32: 1>} : vector<16x128xi32>
    %7 = vector.broadcast %1 : vector<16x1xi32> to vector<16x128xi32>
    %8 = arith.cmpi eq, %6, %7 : vector<16x128xi32>
    %9 = arith.extui %8 : vector<16x128xi1> to vector<16x128xi32>
    %10 = arith.sitofp %9 : vector<16x128xi32> to vector<16x128xf32>
    %11 = arith.truncf %10 : vector<16x128xf32> to vector<16x128xbf16>
    %c0_4 = arith.constant 0 : index
    %c0_5 = arith.constant 0 : index
    %c0_6 = arith.constant 0 : index
    %12 = vector.load %arg1[%c0_4, %c0_5, %c0_6] : memref<11x128x128xbf16, #tpu.memory_space<vmem>>, vector<1x128x32xbf16>
    %13 = vector.shape_cast %12 : vector<1x128x32xbf16> to vector<128x32xbf16>
    %cst = arith.constant dense<0.000000e+00> : vector<16x32xf32>
    %14 = tpu.matmul %11, %13, %cst {dimension_numbers = #tpu.dot_dimension_numbers<[1], [0], [0], [1], [0, 0, 1, 1], [], []>} : vector<16x128xbf16>, vector<128x32xbf16>, vector<16x32xf32> -> vector<16x32xf32>
    %c0_7 = arith.constant 0 : index
    %c0_8 = arith.constant 0 : index
    %15 = vector.load %arg2[%c0_7, %c0_8] : memref<40x128xf32, #tpu.memory_space<vmem>>, vector<16x32xf32>
    %16 = arith.addf %14, %15 : vector<16x32xf32>
    %cst_9 = arith.constant 0.000000e+00 : f32
    %17 = vector.broadcast %cst_9 : f32 to vector<16x1xf32>
    %18 = arith.cmpf oeq, %2, %17 : vector<16x1xf32>
    %c18_10 = arith.constant 18 : index
    %c0_11 = arith.constant 0 : index
    %19 = vector.load %arg2[%c18_10, %c0_11] : memref<40x128xf32, #tpu.memory_space<vmem>>, vector<1x32xf32>
    %c19 = arith.constant 19 : index
    %c0_12 = arith.constant 0 : index
    %20 = vector.load %arg2[%c19, %c0_12] : memref<40x128xf32, #tpu.memory_space<vmem>>, vector<1x32xf32>
    %21 = vector.shape_cast %18 : vector<16x1xi1> to vector<16x1xi1>
    %22 = vector.broadcast %21 : vector<16x1xi1> to vector<16x32xi1>
    %23 = vector.shape_cast %19 : vector<1x32xf32> to vector<1x32xf32>
    %24 = vector.broadcast %23 : vector<1x32xf32> to vector<16x32xf32>
    %25 = vector.shape_cast %20 : vector<1x32xf32> to vector<1x32xf32>
    %26 = vector.broadcast %25 : vector<1x32xf32> to vector<16x32xf32>
    %27 = arith.select %22, %24, %26 : vector<16x32xi1>, vector<16x32xf32>
    %28 = arith.addf %16, %27 : vector<16x32xf32>
    %c16_13 = arith.constant 16 : index
    %c0_14 = arith.constant 0 : index
    %29 = vector.load %arg2[%c16_13, %c0_14] : memref<40x128xf32, #tpu.memory_space<vmem>>, vector<1x32xf32>
    %c17 = arith.constant 17 : index
    %c0_15 = arith.constant 0 : index
    %30 = vector.load %arg2[%c17, %c0_15] : memref<40x128xf32, #tpu.memory_space<vmem>>, vector<1x32xf32>
    %cst_16 = arith.constant dense<0.000000e+00> : vector<16xf32>
    %31 = vector.multi_reduction <add>, %28, %cst_16 [1] : vector<16x32xf32> to vector<16xf32>
    %32 = vector.shape_cast %31 : vector<16xf32> to vector<16x1xf32>
    %cst_17 = arith.constant 3.200000e+01 : f32
    %33 = vector.broadcast %cst_17 : f32 to vector<16x1xf32>
    %34 = arith.divf %32, %33 : vector<16x1xf32>
    %35 = vector.broadcast %34 : vector<16x1xf32> to vector<16x32xf32>
    %36 = arith.subf %28, %35 : vector<16x32xf32>
    %37 = arith.mulf %36, %36 : vector<16x32xf32>
    %cst_18 = arith.constant dense<0.000000e+00> : vector<16xf32>
    %38 = vector.multi_reduction <add>, %37, %cst_18 [1] : vector<16x32xf32> to vector<16xf32>
    %39 = vector.shape_cast %38 : vector<16xf32> to vector<16x1xf32>
    %cst_19 = arith.constant 3.200000e+01 : f32
    %40 = vector.broadcast %cst_19 : f32 to vector<16x1xf32>
    %41 = arith.divf %39, %40 : vector<16x1xf32>
    %42 = vector.broadcast %34 : vector<16x1xf32> to vector<16x32xf32>
    %43 = arith.subf %28, %42 : vector<16x32xf32>
    %cst_20 = arith.constant 9.99999996E-13 : f32
    %44 = vector.broadcast %cst_20 : f32 to vector<16x1xf32>
    %45 = arith.addf %41, %44 : vector<16x1xf32>
    %46 = math.rsqrt %45 : vector<16x1xf32>
    %47 = vector.broadcast %46 : vector<16x1xf32> to vector<16x32xf32>
    %48 = arith.mulf %43, %47 : vector<16x32xf32>
    %49 = vector.broadcast %29 : vector<1x32xf32> to vector<16x32xf32>
    %50 = arith.mulf %48, %49 : vector<16x32xf32>
    %51 = vector.broadcast %30 : vector<1x32xf32> to vector<16x32xf32>
    %52 = arith.addf %50, %51 : vector<16x32xf32>
    %cst_21 = arith.constant 1.000000e+00 : f32
    %53 = vector.broadcast %cst_21 : f32 to vector<2x8xf32>
    %54 = arith.subf %53, %3 : vector<2x8xf32>
    %cst_22 = arith.constant -1.000000e+04 : f32
    %55 = vector.broadcast %cst_22 : f32 to vector<2x8xf32>
    %56 = arith.mulf %54, %55 : vector<2x8xf32>
    %c1_23 = arith.constant 1 : index
    %c0_24 = arith.constant 0 : index
    %c0_25 = arith.constant 0 : index
    %57 = vector.load %arg1[%c1_23, %c0_24, %c0_25] : memref<11x128x128xbf16, #tpu.memory_space<vmem>>, vector<1x32x96xbf16>
    %58 = vector.shape_cast %57 : vector<1x32x96xbf16> to vector<32x96xbf16>
    %59 = arith.truncf %52 : vector<16x32xf32> to vector<16x32xbf16>
    %cst_26 = arith.constant dense<0.000000e+00> : vector<16x96xf32>
    %60 = tpu.matmul %59, %58, %cst_26 {dimension_numbers = #tpu.dot_dimension_numbers<[1], [0], [0], [1], [0, 0, 1, 1], [], []>} : vector<16x32xbf16>, vector<32x96xbf16>, vector<16x96xf32> -> vector<16x96xf32>
    %c20 = arith.constant 20 : index
    %c0_27 = arith.constant 0 : index
    %61 = vector.load %arg2[%c20, %c0_27] : memref<40x128xf32, #tpu.memory_space<vmem>>, vector<1x96xf32>
    %62 = vector.broadcast %61 : vector<1x96xf32> to vector<16x96xf32>
    %63 = arith.addf %60, %62 : vector<16x96xf32>
    %64 = vector.extract_strided_slice %63 {offsets = [0, 0], sizes = [16, 16], strides = [1, 1]} : vector<16x96xf32> to vector<16x16xf32>
    %65 = vector.shape_cast %64 : vector<16x16xf32> to vector<2x8x16xf32>
    %66 = vector.extract_strided_slice %63 {offsets = [0, 32], sizes = [16, 16], strides = [1, 1]} : vector<16x96xf32> to vector<16x16xf32>
    %67 = vector.shape_cast %66 : vector<16x16xf32> to vector<2x8x16xf32>
    %68 = vector.extract_strided_slice %63 {offsets = [0, 64], sizes = [16, 16], strides = [1, 1]} : vector<16x96xf32> to vector<16x16xf32>
    %69 = vector.shape_cast %68 : vector<16x16xf32> to vector<2x8x16xf32>
    %70 = arith.truncf %65 : vector<2x8x16xf32> to vector<2x8x16xbf16>
    %71 = arith.truncf %67 : vector<2x8x16xf32> to vector<2x8x16xbf16>
    "tpu.trace_start"() <{level = 10 : i32, message = "bqd,bkd->bqk"}> : () -> ()
    %cst_28 = arith.constant dense<0.000000e+00> : vector<2x8x8xf32>
    %72 = tpu.matmul %70, %71, %cst_28 {dimension_numbers = #tpu.dot_dimension_numbers<[2], [2], [1], [1], [0, 0, 0, 1, 1, 1], [0], [0]>} : vector<2x8x16xbf16>, vector<2x8x16xbf16>, vector<2x8x8xf32> -> vector<2x8x8xf32>
    "tpu.trace_stop"() : () -> ()
    %73 = vector.shape_cast %56 : vector<2x8xf32> to vector<2x1x8xf32>
    %74 = vector.broadcast %73 : vector<2x1x8xf32> to vector<2x8x8xf32>
    %75 = arith.addf %72, %74 : vector<2x8x8xf32>
    %cst_29 = arith.constant dense<0xFF800000> : vector<2x8xf32>
    %76 = vector.multi_reduction <maximumf>, %75, %cst_29 [2] : vector<2x8x8xf32> to vector<2x8xf32>
    %77 = vector.shape_cast %76 : vector<2x8xf32> to vector<2x8x1xf32>
    %78 = vector.broadcast %77 : vector<2x8x1xf32> to vector<2x8x8xf32>
    %79 = arith.subf %75, %78 : vector<2x8x8xf32>
    %80 = math.exp %79 : vector<2x8x8xf32>
    %cst_30 = arith.constant dense<0.000000e+00> : vector<2x8xf32>
    %81 = vector.multi_reduction <add>, %80, %cst_30 [2] : vector<2x8x8xf32> to vector<2x8xf32>
    %82 = vector.shape_cast %81 : vector<2x8xf32> to vector<2x8x1xf32>
    %83 = vector.broadcast %82 : vector<2x8x1xf32> to vector<2x8x8xf32>
    %84 = arith.divf %80, %83 : vector<2x8x8xf32>
    %85 = arith.truncf %84 : vector<2x8x8xf32> to vector<2x8x8xbf16>
    %86 = arith.truncf %69 : vector<2x8x16xf32> to vector<2x8x16xbf16>
    "tpu.trace_start"() <{level = 10 : i32, message = "bqk,bkd->bqd"}> : () -> ()
    %cst_31 = arith.constant dense<0.000000e+00> : vector<2x8x16xf32>
    %87 = tpu.matmul %85, %86, %cst_31 {dimension_numbers = #tpu.dot_dimension_numbers<[2], [1], [1], [2], [0, 0, 0, 1, 1, 2], [0], [0]>} : vector<2x8x8xbf16>, vector<2x8x16xbf16>, vector<2x8x16xf32> -> vector<2x8x16xf32>
    "tpu.trace_stop"() : () -> ()
    %88 = vector.shape_cast %87 : vector<2x8x16xf32> to vector<16x16xf32>
    %89 = vector.extract_strided_slice %63 {offsets = [0, 16], sizes = [16, 16], strides = [1, 1]} : vector<16x96xf32> to vector<16x16xf32>
    %90 = vector.shape_cast %89 : vector<16x16xf32> to vector<2x8x16xf32>
    %91 = vector.extract_strided_slice %63 {offsets = [0, 48], sizes = [16, 16], strides = [1, 1]} : vector<16x96xf32> to vector<16x16xf32>
    %92 = vector.shape_cast %91 : vector<16x16xf32> to vector<2x8x16xf32>
    %93 = vector.extract_strided_slice %63 {offsets = [0, 80], sizes = [16, 16], strides = [1, 1]} : vector<16x96xf32> to vector<16x16xf32>
    %94 = vector.shape_cast %93 : vector<16x16xf32> to vector<2x8x16xf32>
    %95 = arith.truncf %90 : vector<2x8x16xf32> to vector<2x8x16xbf16>
    %96 = arith.truncf %92 : vector<2x8x16xf32> to vector<2x8x16xbf16>
    "tpu.trace_start"() <{level = 10 : i32, message = "bqd,bkd->bqk"}> : () -> ()
    %cst_32 = arith.constant dense<0.000000e+00> : vector<2x8x8xf32>
    %97 = tpu.matmul %95, %96, %cst_32 {dimension_numbers = #tpu.dot_dimension_numbers<[2], [2], [1], [1], [0, 0, 0, 1, 1, 1], [0], [0]>} : vector<2x8x16xbf16>, vector<2x8x16xbf16>, vector<2x8x8xf32> -> vector<2x8x8xf32>
    "tpu.trace_stop"() : () -> ()
    %98 = vector.shape_cast %56 : vector<2x8xf32> to vector<2x1x8xf32>
    %99 = vector.broadcast %98 : vector<2x1x8xf32> to vector<2x8x8xf32>
    %100 = arith.addf %97, %99 : vector<2x8x8xf32>
    %cst_33 = arith.constant dense<0xFF800000> : vector<2x8xf32>
    %101 = vector.multi_reduction <maximumf>, %100, %cst_33 [2] : vector<2x8x8xf32> to vector<2x8xf32>
    %102 = vector.shape_cast %101 : vector<2x8xf32> to vector<2x8x1xf32>
    %103 = vector.broadcast %102 : vector<2x8x1xf32> to vector<2x8x8xf32>
    %104 = arith.subf %100, %103 : vector<2x8x8xf32>
    %105 = math.exp %104 : vector<2x8x8xf32>
    %cst_34 = arith.constant dense<0.000000e+00> : vector<2x8xf32>
    %106 = vector.multi_reduction <add>, %105, %cst_34 [2] : vector<2x8x8xf32> to vector<2x8xf32>
    %107 = vector.shape_cast %106 : vector<2x8xf32> to vector<2x8x1xf32>
    %108 = vector.broadcast %107 : vector<2x8x1xf32> to vector<2x8x8xf32>
    %109 = arith.divf %105, %108 : vector<2x8x8xf32>
    %110 = arith.truncf %109 : vector<2x8x8xf32> to vector<2x8x8xbf16>
    %111 = arith.truncf %94 : vector<2x8x16xf32> to vector<2x8x16xbf16>
    "tpu.trace_start"() <{level = 10 : i32, message = "bqk,bkd->bqd"}> : () -> ()
    %cst_35 = arith.constant dense<0.000000e+00> : vector<2x8x16xf32>
    %112 = tpu.matmul %110, %111, %cst_35 {dimension_numbers = #tpu.dot_dimension_numbers<[2], [1], [1], [2], [0, 0, 0, 1, 1, 2], [0], [0]>} : vector<2x8x8xbf16>, vector<2x8x16xbf16>, vector<2x8x16xf32> -> vector<2x8x16xf32>
    "tpu.trace_stop"() : () -> ()
    %113 = vector.shape_cast %112 : vector<2x8x16xf32> to vector<16x16xf32>
    %114 = tpu.concatenate %88, %113 in 1 : vector<16x16xf32>, vector<16x16xf32> -> vector<16x32xf32>
    %c2 = arith.constant 2 : index
    %c0_36 = arith.constant 0 : index
    %c0_37 = arith.constant 0 : index
    %115 = vector.load %arg1[%c2, %c0_36, %c0_37] : memref<11x128x128xbf16, #tpu.memory_space<vmem>>, vector<1x32x32xbf16>
    %116 = vector.shape_cast %115 : vector<1x32x32xbf16> to vector<32x32xbf16>
    %117 = arith.truncf %114 : vector<16x32xf32> to vector<16x32xbf16>
    %cst_38 = arith.constant dense<0.000000e+00> : vector<16x32xf32>
    %118 = tpu.matmul %117, %116, %cst_38 {dimension_numbers = #tpu.dot_dimension_numbers<[1], [0], [0], [1], [0, 0, 1, 1], [], []>} : vector<16x32xbf16>, vector<32x32xbf16>, vector<16x32xf32> -> vector<16x32xf32>
    %c21 = arith.constant 21 : index
    %c0_39 = arith.constant 0 : index
    %119 = vector.load %arg2[%c21, %c0_39] : memref<40x128xf32, #tpu.memory_space<vmem>>, vector<1x32xf32>
    %120 = vector.broadcast %119 : vector<1x32xf32> to vector<16x32xf32>
    %121 = arith.addf %118, %120 : vector<16x32xf32>
    %122 = arith.addf %121, %52 : vector<16x32xf32>
    %c22 = arith.constant 22 : index
    %c0_40 = arith.constant 0 : index
    %123 = vector.load %arg2[%c22, %c0_40] : memref<40x128xf32, #tpu.memory_space<vmem>>, vector<1x32xf32>
    %c23 = arith.constant 23 : index
    %c0_41 = arith.constant 0 : index
    %124 = vector.load %arg2[%c23, %c0_41] : memref<40x128xf32, #tpu.memory_space<vmem>>, vector<1x32xf32>
    %cst_42 = arith.constant dense<0.000000e+00> : vector<16xf32>
    %125 = vector.multi_reduction <add>, %122, %cst_42 [1] : vector<16x32xf32> to vector<16xf32>
    %126 = vector.shape_cast %125 : vector<16xf32> to vector<16x1xf32>
    %cst_43 = arith.constant 3.200000e+01 : f32
    %127 = vector.broadcast %cst_43 : f32 to vector<16x1xf32>
    %128 = arith.divf %126, %127 : vector<16x1xf32>
    %129 = vector.broadcast %128 : vector<16x1xf32> to vector<16x32xf32>
    %130 = arith.subf %122, %129 : vector<16x32xf32>
    %131 = arith.mulf %130, %130 : vector<16x32xf32>
    %cst_44 = arith.constant dense<0.000000e+00> : vector<16xf32>
    %132 = vector.multi_reduction <add>, %131, %cst_44 [1] : vector<16x32xf32> to vector<16xf32>
    %133 = vector.shape_cast %132 : vector<16xf32> to vector<16x1xf32>
    %cst_45 = arith.constant 3.200000e+01 : f32
    %134 = vector.broadcast %cst_45 : f32 to vector<16x1xf32>
    %135 = arith.divf %133, %134 : vector<16x1xf32>
    %136 = vector.broadcast %128 : vector<16x1xf32> to vector<16x32xf32>
    %137 = arith.subf %122, %136 : vector<16x32xf32>
    %cst_46 = arith.constant 9.99999996E-13 : f32
    %138 = vector.broadcast %cst_46 : f32 to vector<16x1xf32>
    %139 = arith.addf %135, %138 : vector<16x1xf32>
    %140 = math.rsqrt %139 : vector<16x1xf32>
    %141 = vector.broadcast %140 : vector<16x1xf32> to vector<16x32xf32>
    %142 = arith.mulf %137, %141 : vector<16x32xf32>
    %143 = vector.broadcast %123 : vector<1x32xf32> to vector<16x32xf32>
    %144 = arith.mulf %142, %143 : vector<16x32xf32>
    %145 = vector.broadcast %124 : vector<1x32xf32> to vector<16x32xf32>
    %146 = arith.addf %144, %145 : vector<16x32xf32>
    %c3 = arith.constant 3 : index
    %c0_47 = arith.constant 0 : index
    %c0_48 = arith.constant 0 : index
    %147 = vector.load %arg1[%c3, %c0_47, %c0_48] : memref<11x128x128xbf16, #tpu.memory_space<vmem>>, vector<1x32x64xbf16>
    %148 = vector.shape_cast %147 : vector<1x32x64xbf16> to vector<32x64xbf16>
    %149 = arith.truncf %146 : vector<16x32xf32> to vector<16x32xbf16>
    %cst_49 = arith.constant dense<0.000000e+00> : vector<16x64xf32>
    %150 = tpu.matmul %149, %148, %cst_49 {dimension_numbers = #tpu.dot_dimension_numbers<[1], [0], [0], [1], [0, 0, 1, 1], [], []>} : vector<16x32xbf16>, vector<32x64xbf16>, vector<16x64xf32> -> vector<16x64xf32>
    %c24 = arith.constant 24 : index
    %c0_50 = arith.constant 0 : index
    %151 = vector.load %arg2[%c24, %c0_50] : memref<40x128xf32, #tpu.memory_space<vmem>>, vector<1x64xf32>
    %152 = vector.broadcast %151 : vector<1x64xf32> to vector<16x64xf32>
    %153 = arith.addf %150, %152 : vector<16x64xf32>
    %154 = arith.mulf %153, %153 : vector<16x64xf32>
    %155 = arith.mulf %153, %154 : vector<16x64xf32>
    %cst_51 = arith.constant 4.471500e-02 : f32
    %156 = vector.broadcast %cst_51 : f32 to vector<16x64xf32>
    %157 = arith.mulf %156, %155 : vector<16x64xf32>
    %158 = arith.addf %153, %157 : vector<16x64xf32>
    %cst_52 = arith.constant 0.797884583 : f32
    %159 = vector.broadcast %cst_52 : f32 to vector<16x64xf32>
    %160 = arith.mulf %159, %158 : vector<16x64xf32>
    %161 = math.tanh %160 : vector<16x64xf32>
    %cst_53 = arith.constant 1.000000e+00 : f32
    %162 = vector.broadcast %cst_53 : f32 to vector<16x64xf32>
    %163 = arith.addf %162, %161 : vector<16x64xf32>
    %cst_54 = arith.constant 5.000000e-01 : f32
    %164 = vector.broadcast %cst_54 : f32 to vector<16x64xf32>
    %165 = arith.mulf %164, %163 : vector<16x64xf32>
    %166 = arith.mulf %153, %165 : vector<16x64xf32>
    %c4 = arith.constant 4 : index
    %c0_55 = arith.constant 0 : index
    %c0_56 = arith.constant 0 : index
    %167 = vector.load %arg1[%c4, %c0_55, %c0_56] : memref<11x128x128xbf16, #tpu.memory_space<vmem>>, vector<1x64x32xbf16>
    %168 = vector.shape_cast %167 : vector<1x64x32xbf16> to vector<64x32xbf16>
    %169 = arith.truncf %166 : vector<16x64xf32> to vector<16x64xbf16>
    %cst_57 = arith.constant dense<0.000000e+00> : vector<16x32xf32>
    %170 = tpu.matmul %169, %168, %cst_57 {dimension_numbers = #tpu.dot_dimension_numbers<[1], [0], [0], [1], [0, 0, 1, 1], [], []>} : vector<16x64xbf16>, vector<64x32xbf16>, vector<16x32xf32> -> vector<16x32xf32>
    %c25 = arith.constant 25 : index
    %c0_58 = arith.constant 0 : index
    %171 = vector.load %arg2[%c25, %c0_58] : memref<40x128xf32, #tpu.memory_space<vmem>>, vector<1x32xf32>
    %172 = vector.broadcast %171 : vector<1x32xf32> to vector<16x32xf32>
    %173 = arith.addf %170, %172 : vector<16x32xf32>
    %174 = arith.addf %173, %146 : vector<16x32xf32>
    %c26 = arith.constant 26 : index
    %c0_59 = arith.constant 0 : index
    %175 = vector.load %arg2[%c26, %c0_59] : memref<40x128xf32, #tpu.memory_space<vmem>>, vector<1x32xf32>
    %c27 = arith.constant 27 : index
    %c0_60 = arith.constant 0 : index
    %176 = vector.load %arg2[%c27, %c0_60] : memref<40x128xf32, #tpu.memory_space<vmem>>, vector<1x32xf32>
    %cst_61 = arith.constant dense<0.000000e+00> : vector<16xf32>
    %177 = vector.multi_reduction <add>, %174, %cst_61 [1] : vector<16x32xf32> to vector<16xf32>
    %178 = vector.shape_cast %177 : vector<16xf32> to vector<16x1xf32>
    %cst_62 = arith.constant 3.200000e+01 : f32
    %179 = vector.broadcast %cst_62 : f32 to vector<16x1xf32>
    %180 = arith.divf %178, %179 : vector<16x1xf32>
    %181 = vector.broadcast %180 : vector<16x1xf32> to vector<16x32xf32>
    %182 = arith.subf %174, %181 : vector<16x32xf32>
    %183 = arith.mulf %182, %182 : vector<16x32xf32>
    %cst_63 = arith.constant dense<0.000000e+00> : vector<16xf32>
    %184 = vector.multi_reduction <add>, %183, %cst_63 [1] : vector<16x32xf32> to vector<16xf32>
    %185 = vector.shape_cast %184 : vector<16xf32> to vector<16x1xf32>
    %cst_64 = arith.constant 3.200000e+01 : f32
    %186 = vector.broadcast %cst_64 : f32 to vector<16x1xf32>
    %187 = arith.divf %185, %186 : vector<16x1xf32>
    %188 = vector.broadcast %180 : vector<16x1xf32> to vector<16x32xf32>
    %189 = arith.subf %174, %188 : vector<16x32xf32>
    %cst_65 = arith.constant 9.99999996E-13 : f32
    %190 = vector.broadcast %cst_65 : f32 to vector<16x1xf32>
    %191 = arith.addf %187, %190 : vector<16x1xf32>
    %192 = math.rsqrt %191 : vector<16x1xf32>
    %193 = vector.broadcast %192 : vector<16x1xf32> to vector<16x32xf32>
    %194 = arith.mulf %189, %193 : vector<16x32xf32>
    %195 = vector.broadcast %175 : vector<1x32xf32> to vector<16x32xf32>
    %196 = arith.mulf %194, %195 : vector<16x32xf32>
    %197 = vector.broadcast %176 : vector<1x32xf32> to vector<16x32xf32>
    %198 = arith.addf %196, %197 : vector<16x32xf32>
    %c5 = arith.constant 5 : index
    %c0_66 = arith.constant 0 : index
    %c0_67 = arith.constant 0 : index
    %199 = vector.load %arg1[%c5, %c0_66, %c0_67] : memref<11x128x128xbf16, #tpu.memory_space<vmem>>, vector<1x32x96xbf16>
    %200 = vector.shape_cast %199 : vector<1x32x96xbf16> to vector<32x96xbf16>
    %201 = arith.truncf %198 : vector<16x32xf32> to vector<16x32xbf16>
    %cst_68 = arith.constant dense<0.000000e+00> : vector<16x96xf32>
    %202 = tpu.matmul %201, %200, %cst_68 {dimension_numbers = #tpu.dot_dimension_numbers<[1], [0], [0], [1], [0, 0, 1, 1], [], []>} : vector<16x32xbf16>, vector<32x96xbf16>, vector<16x96xf32> -> vector<16x96xf32>
    %c28 = arith.constant 28 : index
    %c0_69 = arith.constant 0 : index
    %203 = vector.load %arg2[%c28, %c0_69] : memref<40x128xf32, #tpu.memory_space<vmem>>, vector<1x96xf32>
    %204 = vector.broadcast %203 : vector<1x96xf32> to vector<16x96xf32>
    %205 = arith.addf %202, %204 : vector<16x96xf32>
    %206 = vector.extract_strided_slice %205 {offsets = [0, 0], sizes = [16, 16], strides = [1, 1]} : vector<16x96xf32> to vector<16x16xf32>
    %207 = vector.shape_cast %206 : vector<16x16xf32> to vector<2x8x16xf32>
    %208 = vector.extract_strided_slice %205 {offsets = [0, 32], sizes = [16, 16], strides = [1, 1]} : vector<16x96xf32> to vector<16x16xf32>
    %209 = vector.shape_cast %208 : vector<16x16xf32> to vector<2x8x16xf32>
    %210 = vector.extract_strided_slice %205 {offsets = [0, 64], sizes = [16, 16], strides = [1, 1]} : vector<16x96xf32> to vector<16x16xf32>
    %211 = vector.shape_cast %210 : vector<16x16xf32> to vector<2x8x16xf32>
    %212 = arith.truncf %207 : vector<2x8x16xf32> to vector<2x8x16xbf16>
    %213 = arith.truncf %209 : vector<2x8x16xf32> to vector<2x8x16xbf16>
    "tpu.trace_start"() <{level = 10 : i32, message = "bqd,bkd->bqk"}> : () -> ()
    %cst_70 = arith.constant dense<0.000000e+00> : vector<2x8x8xf32>
    %214 = tpu.matmul %212, %213, %cst_70 {dimension_numbers = #tpu.dot_dimension_numbers<[2], [2], [1], [1], [0, 0, 0, 1, 1, 1], [0], [0]>} : vector<2x8x16xbf16>, vector<2x8x16xbf16>, vector<2x8x8xf32> -> vector<2x8x8xf32>
    "tpu.trace_stop"() : () -> ()
    %215 = vector.shape_cast %56 : vector<2x8xf32> to vector<2x1x8xf32>
    %216 = vector.broadcast %215 : vector<2x1x8xf32> to vector<2x8x8xf32>
    %217 = arith.addf %214, %216 : vector<2x8x8xf32>
    %cst_71 = arith.constant dense<0xFF800000> : vector<2x8xf32>
    %218 = vector.multi_reduction <maximumf>, %217, %cst_71 [2] : vector<2x8x8xf32> to vector<2x8xf32>
    %219 = vector.shape_cast %218 : vector<2x8xf32> to vector<2x8x1xf32>
    %220 = vector.broadcast %219 : vector<2x8x1xf32> to vector<2x8x8xf32>
    %221 = arith.subf %217, %220 : vector<2x8x8xf32>
    %222 = math.exp %221 : vector<2x8x8xf32>
    %cst_72 = arith.constant dense<0.000000e+00> : vector<2x8xf32>
    %223 = vector.multi_reduction <add>, %222, %cst_72 [2] : vector<2x8x8xf32> to vector<2x8xf32>
    %224 = vector.shape_cast %223 : vector<2x8xf32> to vector<2x8x1xf32>
    %225 = vector.broadcast %224 : vector<2x8x1xf32> to vector<2x8x8xf32>
    %226 = arith.divf %222, %225 : vector<2x8x8xf32>
    %227 = arith.truncf %226 : vector<2x8x8xf32> to vector<2x8x8xbf16>
    %228 = arith.truncf %211 : vector<2x8x16xf32> to vector<2x8x16xbf16>
    "tpu.trace_start"() <{level = 10 : i32, message = "bqk,bkd->bqd"}> : () -> ()
    %cst_73 = arith.constant dense<0.000000e+00> : vector<2x8x16xf32>
    %229 = tpu.matmul %227, %228, %cst_73 {dimension_numbers = #tpu.dot_dimension_numbers<[2], [1], [1], [2], [0, 0, 0, 1, 1, 2], [0], [0]>} : vector<2x8x8xbf16>, vector<2x8x16xbf16>, vector<2x8x16xf32> -> vector<2x8x16xf32>
    "tpu.trace_stop"() : () -> ()
    %230 = vector.shape_cast %229 : vector<2x8x16xf32> to vector<16x16xf32>
    %231 = vector.extract_strided_slice %205 {offsets = [0, 16], sizes = [16, 16], strides = [1, 1]} : vector<16x96xf32> to vector<16x16xf32>
    %232 = vector.shape_cast %231 : vector<16x16xf32> to vector<2x8x16xf32>
    %233 = vector.extract_strided_slice %205 {offsets = [0, 48], sizes = [16, 16], strides = [1, 1]} : vector<16x96xf32> to vector<16x16xf32>
    %234 = vector.shape_cast %233 : vector<16x16xf32> to vector<2x8x16xf32>
    %235 = vector.extract_strided_slice %205 {offsets = [0, 80], sizes = [16, 16], strides = [1, 1]} : vector<16x96xf32> to vector<16x16xf32>
    %236 = vector.shape_cast %235 : vector<16x16xf32> to vector<2x8x16xf32>
    %237 = arith.truncf %232 : vector<2x8x16xf32> to vector<2x8x16xbf16>
    %238 = arith.truncf %234 : vector<2x8x16xf32> to vector<2x8x16xbf16>
    "tpu.trace_start"() <{level = 10 : i32, message = "bqd,bkd->bqk"}> : () -> ()
    %cst_74 = arith.constant dense<0.000000e+00> : vector<2x8x8xf32>
    %239 = tpu.matmul %237, %238, %cst_74 {dimension_numbers = #tpu.dot_dimension_numbers<[2], [2], [1], [1], [0, 0, 0, 1, 1, 1], [0], [0]>} : vector<2x8x16xbf16>, vector<2x8x16xbf16>, vector<2x8x8xf32> -> vector<2x8x8xf32>
    "tpu.trace_stop"() : () -> ()
    %240 = vector.shape_cast %56 : vector<2x8xf32> to vector<2x1x8xf32>
    %241 = vector.broadcast %240 : vector<2x1x8xf32> to vector<2x8x8xf32>
    %242 = arith.addf %239, %241 : vector<2x8x8xf32>
    %cst_75 = arith.constant dense<0xFF800000> : vector<2x8xf32>
    %243 = vector.multi_reduction <maximumf>, %242, %cst_75 [2] : vector<2x8x8xf32> to vector<2x8xf32>
    %244 = vector.shape_cast %243 : vector<2x8xf32> to vector<2x8x1xf32>
    %245 = vector.broadcast %244 : vector<2x8x1xf32> to vector<2x8x8xf32>
    %246 = arith.subf %242, %245 : vector<2x8x8xf32>
    %247 = math.exp %246 : vector<2x8x8xf32>
    %cst_76 = arith.constant dense<0.000000e+00> : vector<2x8xf32>
    %248 = vector.multi_reduction <add>, %247, %cst_76 [2] : vector<2x8x8xf32> to vector<2x8xf32>
    %249 = vector.shape_cast %248 : vector<2x8xf32> to vector<2x8x1xf32>
    %250 = vector.broadcast %249 : vector<2x8x1xf32> to vector<2x8x8xf32>
    %251 = arith.divf %247, %250 : vector<2x8x8xf32>
    %252 = arith.truncf %251 : vector<2x8x8xf32> to vector<2x8x8xbf16>
    %253 = arith.truncf %236 : vector<2x8x16xf32> to vector<2x8x16xbf16>
    "tpu.trace_start"() <{level = 10 : i32, message = "bqk,bkd->bqd"}> : () -> ()
    %cst_77 = arith.constant dense<0.000000e+00> : vector<2x8x16xf32>
    %254 = tpu.matmul %252, %253, %cst_77 {dimension_numbers = #tpu.dot_dimension_numbers<[2], [1], [1], [2], [0, 0, 0, 1, 1, 2], [0], [0]>} : vector<2x8x8xbf16>, vector<2x8x16xbf16>, vector<2x8x16xf32> -> vector<2x8x16xf32>
    "tpu.trace_stop"() : () -> ()
    %255 = vector.shape_cast %254 : vector<2x8x16xf32> to vector<16x16xf32>
    %256 = tpu.concatenate %230, %255 in 1 : vector<16x16xf32>, vector<16x16xf32> -> vector<16x32xf32>
    %c6 = arith.constant 6 : index
    %c0_78 = arith.constant 0 : index
    %c0_79 = arith.constant 0 : index
    %257 = vector.load %arg1[%c6, %c0_78, %c0_79] : memref<11x128x128xbf16, #tpu.memory_space<vmem>>, vector<1x32x32xbf16>
    %258 = vector.shape_cast %257 : vector<1x32x32xbf16> to vector<32x32xbf16>
    %259 = arith.truncf %256 : vector<16x32xf32> to vector<16x32xbf16>
    %cst_80 = arith.constant dense<0.000000e+00> : vector<16x32xf32>
    %260 = tpu.matmul %259, %258, %cst_80 {dimension_numbers = #tpu.dot_dimension_numbers<[1], [0], [0], [1], [0, 0, 1, 1], [], []>} : vector<16x32xbf16>, vector<32x32xbf16>, vector<16x32xf32> -> vector<16x32xf32>
    %c29 = arith.constant 29 : index
    %c0_81 = arith.constant 0 : index
    %261 = vector.load %arg2[%c29, %c0_81] : memref<40x128xf32, #tpu.memory_space<vmem>>, vector<1x32xf32>
    %262 = vector.broadcast %261 : vector<1x32xf32> to vector<16x32xf32>
    %263 = arith.addf %260, %262 : vector<16x32xf32>
    %264 = arith.addf %263, %198 : vector<16x32xf32>
    %c30 = arith.constant 30 : index
    %c0_82 = arith.constant 0 : index
    %265 = vector.load %arg2[%c30, %c0_82] : memref<40x128xf32, #tpu.memory_space<vmem>>, vector<1x32xf32>
    %c31 = arith.constant 31 : index
    %c0_83 = arith.constant 0 : index
    %266 = vector.load %arg2[%c31, %c0_83] : memref<40x128xf32, #tpu.memory_space<vmem>>, vector<1x32xf32>
    %cst_84 = arith.constant dense<0.000000e+00> : vector<16xf32>
    %267 = vector.multi_reduction <add>, %264, %cst_84 [1] : vector<16x32xf32> to vector<16xf32>
    %268 = vector.shape_cast %267 : vector<16xf32> to vector<16x1xf32>
    %cst_85 = arith.constant 3.200000e+01 : f32
    %269 = vector.broadcast %cst_85 : f32 to vector<16x1xf32>
    %270 = arith.divf %268, %269 : vector<16x1xf32>
    %271 = vector.broadcast %270 : vector<16x1xf32> to vector<16x32xf32>
    %272 = arith.subf %264, %271 : vector<16x32xf32>
    %273 = arith.mulf %272, %272 : vector<16x32xf32>
    %cst_86 = arith.constant dense<0.000000e+00> : vector<16xf32>
    %274 = vector.multi_reduction <add>, %273, %cst_86 [1] : vector<16x32xf32> to vector<16xf32>
    %275 = vector.shape_cast %274 : vector<16xf32> to vector<16x1xf32>
    %cst_87 = arith.constant 3.200000e+01 : f32
    %276 = vector.broadcast %cst_87 : f32 to vector<16x1xf32>
    %277 = arith.divf %275, %276 : vector<16x1xf32>
    %278 = vector.broadcast %270 : vector<16x1xf32> to vector<16x32xf32>
    %279 = arith.subf %264, %278 : vector<16x32xf32>
    %cst_88 = arith.constant 9.99999996E-13 : f32
    %280 = vector.broadcast %cst_88 : f32 to vector<16x1xf32>
    %281 = arith.addf %277, %280 : vector<16x1xf32>
    %282 = math.rsqrt %281 : vector<16x1xf32>
    %283 = vector.broadcast %282 : vector<16x1xf32> to vector<16x32xf32>
    %284 = arith.mulf %279, %283 : vector<16x32xf32>
    %285 = vector.broadcast %265 : vector<1x32xf32> to vector<16x32xf32>
    %286 = arith.mulf %284, %285 : vector<16x32xf32>
    %287 = vector.broadcast %266 : vector<1x32xf32> to vector<16x32xf32>
    %288 = arith.addf %286, %287 : vector<16x32xf32>
    %c7 = arith.constant 7 : index
    %c0_89 = arith.constant 0 : index
    %c0_90 = arith.constant 0 : index
    %289 = vector.load %arg1[%c7, %c0_89, %c0_90] : memref<11x128x128xbf16, #tpu.memory_space<vmem>>, vector<1x32x64xbf16>
    %290 = vector.shape_cast %289 : vector<1x32x64xbf16> to vector<32x64xbf16>
    %291 = arith.truncf %288 : vector<16x32xf32> to vector<16x32xbf16>
    %cst_91 = arith.constant dense<0.000000e+00> : vector<16x64xf32>
    %292 = tpu.matmul %291, %290, %cst_91 {dimension_numbers = #tpu.dot_dimension_numbers<[1], [0], [0], [1], [0, 0, 1, 1], [], []>} : vector<16x32xbf16>, vector<32x64xbf16>, vector<16x64xf32> -> vector<16x64xf32>
    %c32 = arith.constant 32 : index
    %c0_92 = arith.constant 0 : index
    %293 = vector.load %arg2[%c32, %c0_92] : memref<40x128xf32, #tpu.memory_space<vmem>>, vector<1x64xf32>
    %294 = vector.broadcast %293 : vector<1x64xf32> to vector<16x64xf32>
    %295 = arith.addf %292, %294 : vector<16x64xf32>
    %296 = arith.mulf %295, %295 : vector<16x64xf32>
    %297 = arith.mulf %295, %296 : vector<16x64xf32>
    %cst_93 = arith.constant 4.471500e-02 : f32
    %298 = vector.broadcast %cst_93 : f32 to vector<16x64xf32>
    %299 = arith.mulf %298, %297 : vector<16x64xf32>
    %300 = arith.addf %295, %299 : vector<16x64xf32>
    %cst_94 = arith.constant 0.797884583 : f32
    %301 = vector.broadcast %cst_94 : f32 to vector<16x64xf32>
    %302 = arith.mulf %301, %300 : vector<16x64xf32>
    %303 = math.tanh %302 : vector<16x64xf32>
    %cst_95 = arith.constant 1.000000e+00 : f32
    %304 = vector.broadcast %cst_95 : f32 to vector<16x64xf32>
    %305 = arith.addf %304, %303 : vector<16x64xf32>
    %cst_96 = arith.constant 5.000000e-01 : f32
    %306 = vector.broadcast %cst_96 : f32 to vector<16x64xf32>
    %307 = arith.mulf %306, %305 : vector<16x64xf32>
    %308 = arith.mulf %295, %307 : vector<16x64xf32>
    %c8 = arith.constant 8 : index
    %c0_97 = arith.constant 0 : index
    %c0_98 = arith.constant 0 : index
    %309 = vector.load %arg1[%c8, %c0_97, %c0_98] : memref<11x128x128xbf16, #tpu.memory_space<vmem>>, vector<1x64x32xbf16>
    %310 = vector.shape_cast %309 : vector<1x64x32xbf16> to vector<64x32xbf16>
    %311 = arith.truncf %308 : vector<16x64xf32> to vector<16x64xbf16>
    %cst_99 = arith.constant dense<0.000000e+00> : vector<16x32xf32>
    %312 = tpu.matmul %311, %310, %cst_99 {dimension_numbers = #tpu.dot_dimension_numbers<[1], [0], [0], [1], [0, 0, 1, 1], [], []>} : vector<16x64xbf16>, vector<64x32xbf16>, vector<16x32xf32> -> vector<16x32xf32>
    %c33 = arith.constant 33 : index
    %c0_100 = arith.constant 0 : index
    %313 = vector.load %arg2[%c33, %c0_100] : memref<40x128xf32, #tpu.memory_space<vmem>>, vector<1x32xf32>
    %314 = vector.broadcast %313 : vector<1x32xf32> to vector<16x32xf32>
    %315 = arith.addf %312, %314 : vector<16x32xf32>
    %316 = arith.addf %315, %288 : vector<16x32xf32>
    %c34 = arith.constant 34 : index
    %c0_101 = arith.constant 0 : index
    %317 = vector.load %arg2[%c34, %c0_101] : memref<40x128xf32, #tpu.memory_space<vmem>>, vector<1x32xf32>
    %c35 = arith.constant 35 : index
    %c0_102 = arith.constant 0 : index
    %318 = vector.load %arg2[%c35, %c0_102] : memref<40x128xf32, #tpu.memory_space<vmem>>, vector<1x32xf32>
    %cst_103 = arith.constant dense<0.000000e+00> : vector<16xf32>
    %319 = vector.multi_reduction <add>, %316, %cst_103 [1] : vector<16x32xf32> to vector<16xf32>
    %320 = vector.shape_cast %319 : vector<16xf32> to vector<16x1xf32>
    %cst_104 = arith.constant 3.200000e+01 : f32
    %321 = vector.broadcast %cst_104 : f32 to vector<16x1xf32>
    %322 = arith.divf %320, %321 : vector<16x1xf32>
    %323 = vector.broadcast %322 : vector<16x1xf32> to vector<16x32xf32>
    %324 = arith.subf %316, %323 : vector<16x32xf32>
    %325 = arith.mulf %324, %324 : vector<16x32xf32>
    %cst_105 = arith.constant dense<0.000000e+00> : vector<16xf32>
    %326 = vector.multi_reduction <add>, %325, %cst_105 [1] : vector<16x32xf32> to vector<16xf32>
    %327 = vector.shape_cast %326 : vector<16xf32> to vector<16x1xf32>
    %cst_106 = arith.constant 3.200000e+01 : f32
    %328 = vector.broadcast %cst_106 : f32 to vector<16x1xf32>
    %329 = arith.divf %327, %328 : vector<16x1xf32>
    %330 = vector.broadcast %322 : vector<16x1xf32> to vector<16x32xf32>
    %331 = arith.subf %316, %330 : vector<16x32xf32>
    %cst_107 = arith.constant 9.99999996E-13 : f32
    %332 = vector.broadcast %cst_107 : f32 to vector<16x1xf32>
    %333 = arith.addf %329, %332 : vector<16x1xf32>
    %334 = math.rsqrt %333 : vector<16x1xf32>
    %335 = vector.broadcast %334 : vector<16x1xf32> to vector<16x32xf32>
    %336 = arith.mulf %331, %335 : vector<16x32xf32>
    %337 = vector.broadcast %317 : vector<1x32xf32> to vector<16x32xf32>
    %338 = arith.mulf %336, %337 : vector<16x32xf32>
    %339 = vector.broadcast %318 : vector<1x32xf32> to vector<16x32xf32>
    %340 = arith.addf %338, %339 : vector<16x32xf32>
    %341 = vector.shape_cast %340 : vector<16x32xf32> to vector<2x8x32xf32>
    %342 = vector.extract_strided_slice %341 {offsets = [0, 0, 0], sizes = [2, 1, 32], strides = [1, 1, 1]} : vector<2x8x32xf32> to vector<2x1x32xf32>
    %343 = vector.shape_cast %342 : vector<2x1x32xf32> to vector<2x32xf32>
    %c9 = arith.constant 9 : index
    %c0_108 = arith.constant 0 : index
    %c0_109 = arith.constant 0 : index
    %344 = vector.load %arg1[%c9, %c0_108, %c0_109] : memref<11x128x128xbf16, #tpu.memory_space<vmem>>, vector<1x32x32xbf16>
    %345 = vector.shape_cast %344 : vector<1x32x32xbf16> to vector<32x32xbf16>
    %346 = arith.truncf %343 : vector<2x32xf32> to vector<2x32xbf16>
    %cst_110 = arith.constant dense<0.000000e+00> : vector<2x32xf32>
    %347 = tpu.matmul %346, %345, %cst_110 {dimension_numbers = #tpu.dot_dimension_numbers<[1], [0], [0], [1], [0, 0, 1, 1], [], []>} : vector<2x32xbf16>, vector<32x32xbf16>, vector<2x32xf32> -> vector<2x32xf32>
    %c36 = arith.constant 36 : index
    %c0_111 = arith.constant 0 : index
    %348 = vector.load %arg2[%c36, %c0_111] : memref<40x128xf32, #tpu.memory_space<vmem>>, vector<1x32xf32>
    %349 = vector.broadcast %348 : vector<1x32xf32> to vector<2x32xf32>
    %350 = arith.addf %347, %349 : vector<2x32xf32>
    %351 = math.tanh %350 : vector<2x32xf32>
    %c10 = arith.constant 10 : index
    %c0_112 = arith.constant 0 : index
    %c0_113 = arith.constant 0 : index
    %352 = vector.load %arg1[%c10, %c0_112, %c0_113] : memref<11x128x128xbf16, #tpu.memory_space<vmem>>, vector<1x32x2xbf16>
    %353 = vector.shape_cast %352 : vector<1x32x2xbf16> to vector<32x2xbf16>
    %354 = arith.truncf %351 : vector<2x32xf32> to vector<2x32xbf16>
    %cst_114 = arith.constant dense<0.000000e+00> : vector<2x2xf32>
    %355 = tpu.matmul %354, %353, %cst_114 {dimension_numbers = #tpu.dot_dimension_numbers<[1], [0], [0], [1], [0, 0, 1, 1], [], []>} : vector<2x32xbf16>, vector<32x2xbf16>, vector<2x2xf32> -> vector<2x2xf32>
    %c37 = arith.constant 37 : index
    %c0_115 = arith.constant 0 : index
    %356 = vector.load %arg2[%c37, %c0_115] : memref<40x128xf32, #tpu.memory_space<vmem>>, vector<1x2xf32>
    %357 = vector.broadcast %356 : vector<1x2xf32> to vector<2x2xf32>
    %358 = arith.addf %355, %357 : vector<2x2xf32>
    %cst_116 = arith.constant 5.000000e-01 : f32
    %359 = vector.broadcast %cst_116 : f32 to vector<2x2xf32>
    %360 = arith.mulf %358, %359 : vector<2x2xf32>
    %361 = math.roundeven %360 : vector<2x2xf32>
    %cst_117 = arith.constant 1.600000e+01 : f32
    %362 = vector.broadcast %cst_117 : f32 to vector<2x2xf32>
    %363 = arith.addf %361, %362 : vector<2x2xf32>
    %cst_118 = arith.constant -1.600000e+01 : f32
    %cst_119 = arith.constant 1.500000e+01 : f32
    %364 = vector.broadcast %cst_118 : f32 to vector<2x2xf32>
    %365 = arith.maximumf %364, %363 : vector<2x2xf32>
    %366 = vector.broadcast %cst_119 : f32 to vector<2x2xf32>
    %367 = arith.minimumf %366, %365 : vector<2x2xf32>
    %cst_120 = arith.constant dense<0xFF800000> : vector<2xf32>
    %368 = vector.multi_reduction <maximumf>, %367, %cst_120 [1] : vector<2x2xf32> to vector<2xf32>
    %369 = vector.shape_cast %368 : vector<2xf32> to vector<2x1xf32>
    %370 = vector.broadcast %369 : vector<2x1xf32> to vector<2x2xf32>
    %371 = arith.subf %367, %370 : vector<2x2xf32>
    %372 = math.exp %371 : vector<2x2xf32>
    %cst_121 = arith.constant dense<0.000000e+00> : vector<2xf32>
    %373 = vector.multi_reduction <add>, %372, %cst_121 [1] : vector<2x2xf32> to vector<2xf32>
    %374 = vector.shape_cast %373 : vector<2xf32> to vector<2x1xf32>
    %375 = math.log %374 : vector<2x1xf32>
    %376 = vector.broadcast %375 : vector<2x1xf32> to vector<2x2xf32>
    %377 = arith.subf %371, %376 : vector<2x2xf32>
    %378 = tpu.iota {dimensions = array<i32: 1>} : vector<2x2xi32>
    %379 = vector.broadcast %5 : vector<2x1xi32> to vector<2x2xi32>
    %380 = arith.cmpi eq, %378, %379 : vector<2x2xi32>
    %381 = arith.extui %380 : vector<2x2xi1> to vector<2x2xi32>
    %382 = arith.sitofp %381 : vector<2x2xi32> to vector<2x2xf32>
    %383 = arith.mulf %377, %382 : vector<2x2xf32>
    %cst_122 = arith.constant dense<0.000000e+00> : vector<2xf32>
    %384 = vector.multi_reduction <add>, %383, %cst_122 [1] : vector<2x2xf32> to vector<2xf32>
    %385 = vector.shape_cast %384 : vector<2xf32> to vector<2x1xf32>
    %cst_123 = arith.constant 0.000000e+00 : f32
    %386 = vector.broadcast %cst_123 : f32 to vector<2x1xf32>
    %387 = arith.subf %386, %385 : vector<2x1xf32>
    %cst_124 = arith.constant dense<0.000000e+00> : vector<1xf32>
    %388 = vector.multi_reduction <add>, %387, %cst_124 [0] : vector<2x1xf32> to vector<1xf32>
    %389 = vector.shape_cast %388 : vector<1xf32> to vector<1x1xf32>
    %cst_125 = arith.constant 5.000000e-01 : f32
    %390 = vector.broadcast %cst_125 : f32 to vector<1x1xf32>
    %391 = arith.mulf %389, %390 : vector<1x1xf32>
    %cst_126 = arith.constant 0.000000e+00 : f32
    %392 = vector.broadcast %cst_126 : f32 to vector<8x128xf32>
    %c0_127 = arith.constant 0 : index
    %c0_128 = arith.constant 0 : index
    %393 = vector.load %arg3[%c0_127, %c0_128] : memref<8x128xf32, #tpu.memory_space<vmem>>, vector<8x128xf32>
    tpu.vector_store %arg3[%c0_127, %c0_128], %392 {strides = array<i32>} : memref<8x128xf32, #tpu.memory_space<vmem>>, vector<8x128xf32>,
    %c0_129 = arith.constant 0 : index
    %c0_130 = arith.constant 0 : index
    %394 = vector.load %arg3[%c0_129, %c0_130] : memref<8x128xf32, #tpu.memory_space<vmem>>, vector<2x2xf32>
    tpu.vector_store %arg3[%c0_129, %c0_130], %367 {strides = array<i32>} : memref<8x128xf32, #tpu.memory_space<vmem>>, vector<2x2xf32>,
    %c2_131 = arith.constant 2 : index
    %c0_132 = arith.constant 0 : index
    %395 = vector.load %arg3[%c2_131, %c0_132] : memref<8x128xf32, #tpu.memory_space<vmem>>, vector<1x1xf32>
    tpu.vector_store %arg3[%c2_131, %c0_132], %391 {strides = array<i32>} : memref<8x128xf32, #tpu.memory_space<vmem>>, vector<1x1xf32>,
    return
  }
}

</mosaic_0001>

<llo_original>
// kernel: tpu_custom_call.1
$region0: #{tpu_custom_call.1}
  #allocation0 [shape = 'u32[]', space=smem, size = 0x4, offset = 0x4, fixed_abs, tag = 'smem constant byte address 0x4 - core index']
  #allocation1 [shape = 'u32[144,128]{1,0:T(1,128)}', space=vmem, size = 0x12000, scoped, tag = 'internal scratch']
  %s0 = inlined_call_operand.hbm [shape: f32[24,128], index: 0, kind: input, shape index: {}]
  %s1 = inlined_call_operand.hbm [shape: bf16[11,128,128], index: 1, kind: input, shape index: {}]
  %s2 = inlined_call_operand.hbm [shape: f32[40,128], index: 2, kind: input, shape index: {}]
  %s3 = inlined_call_operand.hbm [shape: f32[8,128], index: 3, kind: output, shape index: {}]
  %s4 = sld [smem:[#allocation0]]
  $region34: #{tpu_custom_call.1} parent=0
    _
  %s6 = ssub.s32 1, %s4
  %s7 = scalar_select 0, %s6, %s4
  $region1: #{tpu_custom_call.1} parent=0
    #allocation2 [shape = 'u8[12288]{0}', space=vmem, size = 0x3000, scoped, tag = 'input window, operand 0, single buffered']
    #allocation3 [shape = 's32[1]{0}', space=sflag, size = 0x4, scoped, tag = 'scoped memory for tpu_custom_call.1']
    #allocation4 [shape = 's32[1]{0}', space=sflag, size = 0x4, scoped, tag = 'scoped memory for tpu_custom_call.1']
    #allocation5 [shape = 'u8[360448]{0}', space=vmem, size = 0x58000, scoped, tag = 'input window, operand 1, single buffered']
    #allocation6 [shape = 's32[1]{0}', space=sflag, size = 0x4, scoped, tag = 'scoped memory for tpu_custom_call.1']
    #allocation7 [shape = 'u8[20480]{0}', space=vmem, size = 0x5000, scoped, tag = 'input window, operand 2, single buffered']
    #allocation8 [shape = 'u8[4096]{0}', space=vmem, size = 0x1000, scoped, tag = 'output window, operand 0, single buffered']
    %8 = vsyncpa [#allocation3], 0
    %9 = vsyncpa [#allocation6], 0
    %10 = vsyncpa [#allocation4], 0
    // Predicated region
    $region2: #{tpu_custom_call.1} parent=1 // pred_check
      _
    $region3: #{tpu_custom_call.1} parent=1 // pred_check_branch
      %12 = sbr.rel (0) target = $region5
    $region4: #{tpu_custom_call.1} parent=1 // pred_region
      %s14 = ssub.s32 384, 384
      %15 = vsyncadd [#allocation3], %s14
      %s16 = sshll.u32 [#allocation2], 4
      %s17 = int_to_ptr.vmem [resolvable:$true] %s16
      %22 = dma.hbm_to_vmem [thread:$0]  %s0, 384, %s17, [#allocation3], 128, 128, 8
    $region5: #{tpu_custom_call.1} parent=1 // pred_fallthru
      _
    // Predicated region
    $region6: #{tpu_custom_call.1} parent=1 // pred_check
      _
    $region7: #{tpu_custom_call.1} parent=1 // pred_check_branch
      %24 = sbr.rel (0) target = $region9
    $region8: #{tpu_custom_call.1} parent=1 // pred_region
      %s26 = ssub.s32 11264, 11264
      %27 = vsyncadd [#allocation6], %s26
      %s28 = sshll.u32 [#allocation5], 4
      %s29 = int_to_ptr.vmem [resolvable:$true] %s28
      %34 = dma.hbm_to_vmem [thread:$0]  %s1, 11264, %s29, [#allocation6], 64, 64, 4
    $region9: #{tpu_custom_call.1} parent=1 // pred_fallthru
      _
    // Predicated region
    $region10: #{tpu_custom_call.1} parent=1 // pred_check
      _
    $region11: #{tpu_custom_call.1} parent=1 // pred_check_branch
      %36 = sbr.rel (0) target = $region13
    $region12: #{tpu_custom_call.1} parent=1 // pred_region
      %s38 = ssub.s32 640, 640
      %39 = vsyncadd [#allocation6], %s38
      %s40 = sshll.u32 [#allocation7], 4
      %s41 = int_to_ptr.vmem [resolvable:$true] %s40
      %46 = dma.hbm_to_vmem [thread:$0]  %s2, 640, %s41, [#allocation6], 128, 128, 8
    $region13: #{tpu_custom_call.1} parent=1 // pred_fallthru
      _
    // Predicated region
    $region14: #{tpu_custom_call.1} parent=1 // pred_check
      _
    $region15: #{tpu_custom_call.1} parent=1 // pred_check_branch
      %48 = sbr.rel (0) target = $region17
    $region16: #{tpu_custom_call.1} parent=1 // pred_region
      %49 = dma.done [#allocation3], 384
    $region17: #{tpu_custom_call.1} parent=1 // pred_fallthru
      _
    // Predicated region
    $region18: #{tpu_custom_call.1} parent=1 // pred_check
      _
    $region19: #{tpu_custom_call.1} parent=1 // pred_check_branch
      %51 = sbr.rel (0) target = $region21
    $region20: #{tpu_custom_call.1} parent=1 // pred_region
      %52 = dma.done [#allocation6], 11264
    $region21: #{tpu_custom_call.1} parent=1 // pred_fallthru
      _
    // Predicated region
    $region22: #{tpu_custom_call.1} parent=1 // pred_check
      _
    $region23: #{tpu_custom_call.1} parent=1 // pred_check_branch
      %54 = sbr.rel (0) target = $region25
    $region24: #{tpu_custom_call.1} parent=1 // pred_region
      %55 = dma.done [#allocation6], 640
    $region25: #{tpu_custom_call.1} parent=1 // pred_fallthru
      _
    %v57 = vld [vmem:[#allocation2] sm:$0xff]
    %v58 = vld [vmem:[#allocation2 + $0x8] sm:$0xff]
    %v59 = vcvt.f32.s32.to.zero.pseudo %v57
    %v60 = vcvt.f32.s32.to.zero.pseudo %v58
    %v61 = vld [vmem:[#allocation2 + $0x10] sm:$0x3]
    %v62 = vld [vmem:[#allocation2 + $0x12] sm:$0x3]
    %v63 = vcvt.f32.s32.to.zero.pseudo %v62
    %v64 = vlaneseq
    %v65 = vand.u32 %v64, 127
    %66 = vset.pattern.permute.xlu0 0
    %67 = vperm.xlu0 %66, %v59
    %v68 = vpop.permute.xlu0 %67
    %69 = vset.pattern.permute.xlu0 0
    %70 = vperm.xlu0 %69, %v60
    %v71 = vpop.permute.xlu0 %70
    %vm72 = vcmp.eq.s32.totalorder %v65, %v68
    %vm73 = vcmp.eq.s32.totalorder %v65, %v71
    %v74 = vsel %vm72, 1, 0
    %v75 = vsel %vm73, 1, 0
    %v76 = vcvt.s32.f32 %v74
    %v77 = vcvt.s32.f32 %v75
    %v78 = vpack.c.bf16 %v77, %v76
    %v79 = vld [vmem:[#allocation5] sm:$0xf]
    %v80 = vld [vmem:[#allocation5 + $0x4] sm:$0xf]
    %v81 = vld [vmem:[#allocation5 + $0x8] sm:$0xf]
    %v82 = vld [vmem:[#allocation5 + $0xc] sm:$0xf]
    %v83 = vld [vmem:[#allocation5 + $0x10] sm:$0xf]
    %v84 = vld [vmem:[#allocation5 + $0x14] sm:$0xf]
    %v85 = vld [vmem:[#allocation5 + $0x18] sm:$0xf]
    %v86 = vld [vmem:[#allocation5 + $0x1c] sm:$0xf]
    %v87 = vld [vmem:[#allocation5 + $0x20] sm:$0xf]
    %v88 = vld [vmem:[#allocation5 + $0x24] sm:$0xf]
    %v89 = vld [vmem:[#allocation5 + $0x28] sm:$0xf]
    %v90 = vld [vmem:[#allocation5 + $0x2c] sm:$0xf]
    %v91 = vld [vmem:[#allocation5 + $0x30] sm:$0xf]
    %v92 = vld [vmem:[#allocation5 + $0x34] sm:$0xf]
    %v93 = vld [vmem:[#allocation5 + $0x38] sm:$0xf]
    %v94 = vld [vmem:[#allocation5 + $0x3c] sm:$0xf]
    %v95 = vld [vmem:[#allocation7] sm:$0xff]
    %v96 = vld [vmem:[#allocation7 + $0x8] sm:$0xff]
    %v113 = vunpack.c.l.b16 %v79
    %v114 = vunpack.c.l.b16 %v80
    %v115 = vunpack.c.l.b16 %v81
    %v116 = vunpack.c.l.b16 %v82
    %v117 = vunpack.c.l.b16 %v83
    %v118 = vunpack.c.l.b16 %v84
    %v119 = vunpack.c.l.b16 %v85
    %v120 = vunpack.c.l.b16 %v86
    %v121 = vunpack.c.l.b16 %v87
    %v122 = vunpack.c.l.b16 %v88
    %v123 = vunpack.c.l.b16 %v89
    %v124 = vunpack.c.l.b16 %v90
    %v125 = vunpack.c.l.b16 %v91
    %v126 = vunpack.c.l.b16 %v92
    %v127 = vunpack.c.l.b16 %v93
    %v128 = vunpack.c.l.b16 %v94
    %v129 = vpack.c.b16 %v114, %v113
    %v130 = vpack.c.b16 %v116, %v115
    %v131 = vpack.c.b16 %v118, %v117
    %v132 = vpack.c.b16 %v120, %v119
    %v133 = vpack.c.b16 %v122, %v121
    %v134 = vpack.c.b16 %v124, %v123
    %v135 = vpack.c.b16 %v126, %v125
    %v136 = vpack.c.b16 %v128, %v127
    %145 = vmatprep.subr.bf16.mxu0 0
    %146 = vmatpush1.bf16.msra.mxu0 %v129
    %147 = vmatprep.subr.bf16.mxu0 0
    %148 = vmatpush1.bf16.msra.mxu0 %v130
    %149 = vmatprep.subr.bf16.mxu0 0
    %150 = vmatpush1.bf16.msra.mxu0 %v131
    %151 = vmatprep.subr.bf16.mxu0 0
    %152 = vmatpush1.bf16.msra.mxu0 %v132
    %153 = vmatprep.subr.bf16.mxu0 0
    %154 = vmatpush1.bf16.msra.mxu0 %v133
    %155 = vmatprep.subr.bf16.mxu0 0
    %156 = vmatpush1.bf16.msra.mxu0 %v134
    %157 = vmatprep.subr.bf16.mxu0 0
    %158 = vmatpush1.bf16.msra.mxu0 %v135
    %159 = vmatprep.subr.bf16.mxu0 0
    %160 = vmatpush1.bf16.msra.mxu0 %v136
    %161 = vmatprep.subr.bf16.mxu0 0
    %162 = vmatpush1.bf16.msra.mxu0 0
    %163 = vmatprep.subr.bf16.mxu0 0
    %164 = vmatpush1.bf16.msra.mxu0 0
    %165 = vmatprep.subr.bf16.mxu0 0
    %166 = vmatpush1.bf16.msra.mxu0 0
    %167 = vmatprep.subr.bf16.mxu0 0
    %168 = vmatpush1.bf16.msra.mxu0 0
    %169 = vmatprep.subr.bf16.mxu0 0
    %170 = vmatpush1.bf16.msra.mxu0 0
    %171 = vmatprep.subr.bf16.mxu0 0
    %172 = vmatpush1.bf16.msra.mxu0 0
    %173 = vmatprep.subr.bf16.mxu0 0
    %174 = vmatpush1.bf16.msra.mxu0 0
    %175 = vmatprep.subr.bf16.mxu0 0
    %176 = vmatpush1.bf16.msra.mxu0 0
    %177 = vmatprep.mubr.bf16.mxu0 0
    %178 = vmatmul.mubr.bf16.gmra.mrb[0].mxu0 %v78
    %v179 = vpop.f32.mrb[0].mxu0
    %v180 = vadd.f32 %v95, %v179
    %v181 = vpop.f32.mrb[0].mxu0
    %v182 = vpop.f32.mrb[0].mxu0
    %v183 = vadd.f32 %v96, %v182
    %v184 = vpop.f32.mrb[0].mxu0
    %185 = vdwg.mxu0
    %vm186 = vcmp.eq.f32.partialorder %v57, 0.0
    %vm187 = vcmp.eq.f32.partialorder %v58, 0.0
    %v188 = vld [vmem:[#allocation7 + $0x12] sm:$0x1]
    %v189 = vld [vmem:[#allocation7 + $0x13] sm:$0x1]
    %v190 = vsel %vm186, 1, 0
    %v191 = vsel %vm187, 1, 0
    %192 = vset.pattern.permute.xlu0 1
    %193 = vperm.xlu0 %192, %v190
    %v194 = vpop.permute.xlu0 %193
    %195 = vset.pattern.permute.xlu0 1
    %196 = vperm.xlu0 %195, %v191
    %v197 = vpop.permute.xlu0 %196
    %vm198 = vcmp.eq.s32.totalorder %v194, 1
    %vm199 = vcmp.eq.s32.totalorder %v197, 1
    %v200 = vlaneseq
    %v201 = vshrl.u32 %v200, 7
    %v202 = vsub.s32 0, %v201
    %v203 = vrot.slane %v188, %v202
    %v204 = vlaneseq
    %v205 = vshrl.u32 %v204, 7
    %v206 = vsub.s32 0, %v205
    %v207 = vrot.slane %v189, %v206
    %v208 = vsel %vm198, %v203, %v207
    %v209 = vsel %vm199, %v203, %v207
    %v210 = vadd.f32 %v180, %v208
    %v211 = vadd.f32 %v183, %v209
    %v212 = vld [vmem:[#allocation7 + $0x10] sm:$0x1]
    %v213 = vld [vmem:[#allocation7 + $0x11] sm:$0x1]
    %vm214 = vcmask 261120
    %v215 = vsel %vm214, %v210, 0.0
    %216 = vadd.xlane.f32.xlu0 %v215
    %v217 = vpop.xlane.xlu0 %216
    %v218 = vsel %vm214, %v211, 0.0
    %219 = vadd.xlane.f32.xlu0 %v218
    %v220 = vpop.xlane.xlu0 %219
    %v221 = vrcp.pop 32.0
    %v222 = vmul.f32 %v217, %v221
    %v223 = vmul.f32 %v220, %v221
    %v224 = vsub.f32 %v210, %v222
    %v225 = vsub.f32 %v211, %v223
    %v226 = vmul.f32 %v224, %v224
    %v227 = vmul.f32 %v225, %v225
    %v228 = vsel %vm214, %v226, 0.0
    %229 = vadd.xlane.f32.xlu0 %v228
    %v230 = vpop.xlane.xlu0 %229
    %v231 = vsel %vm214, %v227, 0.0
    %232 = vadd.xlane.f32.xlu0 %v231
    %v233 = vpop.xlane.xlu0 %232
    %v234 = vmul.f32 %v230, %v221
    %v235 = vmul.f32 %v233, %v221
    %v236 = vadd.f32 %v234, 1e-12
    %v237 = vadd.f32 %v235, 1e-12
    %v238 = vrsqrt.pop %v236
    %v239 = vrsqrt.pop %v237
    %v240 = vmul.f32 %v224, %v238
    %v241 = vmul.f32 %v225, %v239
    %v242 = vlaneseq
    %v243 = vshrl.u32 %v242, 7
    %v244 = vsub.s32 0, %v243
    %v245 = vrot.slane %v212, %v244
    %v246 = vmul.f32 %v240, %v245
    %v247 = vmul.f32 %v241, %v245
    %v248 = vlaneseq
    %v249 = vshrl.u32 %v248, 7
    %v250 = vsub.s32 0, %v249
    %v251 = vrot.slane %v213, %v250
    %v252 = vadd.f32 %v246, %v251
    %v253 = vadd.f32 %v247, %v251
    %v254 = vsub.f32 1.0, %v61
    %v255 = vmul.f32 %v254, -10000.0
    %s256 = scalar_lea.vmem [#allocation5], 64
    %v257 = vld [vmem:[%s256] sm:$0xf]
    %v258 = vld [vmem:[%s256 + $0x4] sm:$0xf]
    %v259 = vld [vmem:[%s256 + $0x8] sm:$0xf]
    %v260 = vld [vmem:[%s256 + $0xc] sm:$0xf]
    %v261 = vpack.c.bf16 %v253, %v252
    %v262 = vld [vmem:[#allocation7 + $0x14] sm:$0x1]
    %v263 = vlaneseq
    %v264 = vshrl.u32 %v263, 7
    %v265 = vsub.s32 0, %v264
    %v266 = vrot.slane %v262, %v265
    %v271 = vunpack.c.l.b16 %v257
    %v272 = vunpack.c.l.b16 %v258
    %v273 = vunpack.c.l.b16 %v259
    %v274 = vunpack.c.l.b16 %v260
    %v275 = vpack.c.b16 %v272, %v271
    %v276 = vpack.c.b16 %v274, %v273
    %v280 = vsel %vm214, %v261, 0
    %282 = vmatprep.subr.bf16.mxu0 0
    %283 = vmatpush1.bf16.msra.mxu0 %v275
    %284 = vmatprep.subr.bf16.mxu0 0
    %285 = vmatpush1.bf16.msra.mxu0 %v276
    %286 = vmatprep.subr.bf16.mxu0 0
    %287 = vmatpush1.bf16.msra.mxu0 0
    %288 = vmatprep.subr.bf16.mxu0 0
    %289 = vmatpush1.bf16.msra.mxu0 0
    %290 = vmatprep.subr.bf16.mxu0 0
    %291 = vmatpush1.bf16.msra.mxu0 0
    %292 = vmatprep.subr.bf16.mxu0 0
    %293 = vmatpush1.bf16.msra.mxu0 0
    %294 = vmatprep.subr.bf16.mxu0 0
    %295 = vmatpush1.bf16.msra.mxu0 0
    %296 = vmatprep.subr.bf16.mxu0 0
    %297 = vmatpush1.bf16.msra.mxu0 0
    %298 = vmatprep.subr.bf16.mxu0 0
    %299 = vmatpush1.bf16.msra.mxu0 0
    %300 = vmatprep.subr.bf16.mxu0 0
    %301 = vmatpush1.bf16.msra.mxu0 0
    %302 = vmatprep.subr.bf16.mxu0 0
    %303 = vmatpush1.bf16.msra.mxu0 0
    %304 = vmatprep.subr.bf16.mxu0 0
    %305 = vmatpush1.bf16.msra.mxu0 0
    %306 = vmatprep.subr.bf16.mxu0 0
    %307 = vmatpush1.bf16.msra.mxu0 0
    %308 = vmatprep.subr.bf16.mxu0 0
    %309 = vmatpush1.bf16.msra.mxu0 0
    %310 = vmatprep.subr.bf16.mxu0 0
    %311 = vmatpush1.bf16.msra.mxu0 0
    %312 = vmatprep.subr.bf16.mxu0 0
    %313 = vmatpush1.bf16.msra.mxu0 0
    %314 = vmatprep.mubr.bf16.mxu0 0
    %315 = vmatmul.mubr.bf16.gmra.mrb[0].mxu0 %v280
    %v316 = vpop.f32.mrb[0].mxu0
    %v317 = vadd.f32 %v266, %v316
    %v318 = vpop.f32.mrb[0].mxu0
    %v319 = vpop.f32.mrb[0].mxu0
    %v320 = vadd.f32 %v266, %v319
    %v321 = vpop.f32.mrb[0].mxu0
    %322 = vdwg.mxu0
    %v323 = vpack.c.bf16 %v317, %v317
    %v324 = vpack.c.bf16 %v320, %v320
    %v327 = vunpack.c.l.s4 1966171168
    %v328 = vunpack.c.0.s8 %v327
    %v329 = vlaneseq
    %v330 = vshrl.u32 %v329, 7
    %v331 = vsub.s32 %v328, %v330
    %v332 = vrot.slane %v255, %v331
    %v333 = vcombine.high %v332, %v332
    %v335 = vunpack.c.l.s4 1966171168
    %v336 = vunpack.c.0.s8 %v335
    %v337 = vlaneseq
    %v338 = vshrl.u32 %v337, 7
    %v339 = vsub.s32 %v336, %v338
    %v340 = vrot.slane %v332, %v339
    %v342 = vunpack.c.l.s4 1966171168
    %v343 = vunpack.c.0.s8 %v342
    %v344 = vlaneseq
    %v345 = vshrl.u32 %v344, 7
    %v346 = vsub.s32 %v343, %v345
    %v347 = vrot.slane %v333, %v346
    %v348 = vlaneseq
    %v349 = vshrl.u32 %v348, 7
    %v350 = vsub.s32 0, %v349
    %v351 = vrot.slane %v340, %v350
    %v352 = vlaneseq
    %v353 = vshrl.u32 %v352, 7
    %v354 = vsub.s32 0, %v353
    %v355 = vrot.slane %v347, %v354
    %359 = vrot.lane.b32.xlu0 %v323, 96
    %v360 = vpop.permute.xlu0 %359
    %vm361 = vcmask 130048
    %v363 = vsel %vm361, %v323, 0
    %v366 = vsel %vm361, %v360, 0
    %368 = vmatprep.subr.bf16.mxu0 0
    %369 = vmatpush1.bf16.xpose.msra.mxu0 %v366
    %370 = vmatprep.subr.bf16.mxu0 0
    %371 = vmatpush1.bf16.xpose.msra.mxu0 0
    %372 = vmatprep.subr.bf16.mxu0 0
    %373 = vmatpush1.bf16.xpose.msra.mxu0 0
    %374 = vmatprep.subr.bf16.mxu0 0
    %375 = vmatpush1.bf16.xpose.msra.mxu0 0
    %376 = vmatprep.subr.bf16.mxu0 0
    %377 = vmatpush1.bf16.xpose.msra.mxu0 0
    %378 = vmatprep.subr.bf16.mxu0 0
    %379 = vmatpush1.bf16.xpose.msra.mxu0 0
    %380 = vmatprep.subr.bf16.mxu0 0
    %381 = vmatpush1.bf16.xpose.msra.mxu0 0
    %382 = vmatprep.subr.bf16.mxu0 0
    %383 = vmatpush1.bf16.xpose.msra.mxu0 0
    %384 = vmatprep.subr.bf16.mxu0 0
    %385 = vmatpush1.bf16.xpose.msra.mxu0 0
    %386 = vmatprep.subr.bf16.mxu0 0
    %387 = vmatpush1.bf16.xpose.msra.mxu0 0
    %388 = vmatprep.subr.bf16.mxu0 0
    %389 = vmatpush1.bf16.xpose.msra.mxu0 0
    %390 = vmatprep.subr.bf16.mxu0 0
    %391 = vmatpush1.bf16.xpose.msra.mxu0 0
    %392 = vmatprep.subr.bf16.mxu0 0
    %393 = vmatpush1.bf16.xpose.msra.mxu0 0
    %394 = vmatprep.subr.bf16.mxu0 0
    %395 = vmatpush1.bf16.xpose.msra.mxu0 0
    %396 = vmatprep.subr.bf16.mxu0 0
    %397 = vmatpush1.bf16.xpose.msra.mxu0 0
    %398 = vmatprep.subr.bf16.mxu0 0
    %399 = vmatpush1.bf16.xpose.msra.mxu0 0
    %400 = vmatprep.mubr.bf16.mxu0 0
    %401 = vmatmul.mubr.bf16.gmra.mrb[0].mxu0 %v363
    %v402 = vpop.f32.mrb[0].mxu0
    %v403 = vadd.f32 %v351, %v402
    %v404 = vpop.f32.mrb[0].mxu0
    %v405 = vpop.f32.mrb[0].mxu0
    %v406 = vpop.f32.mrb[0].mxu0
    %407 = vdwg.mxu0
    %409 = vrot.lane.b32.xlu0 %v324, 96
    %v410 = vpop.permute.xlu0 %409
    %v412 = vsel %vm361, %v324, 0
    %v415 = vsel %vm361, %v410, 0
    %417 = vmatprep.subr.bf16.mxu0 0
    %418 = vmatpush1.bf16.xpose.msra.mxu0 %v415
    %419 = vmatprep.subr.bf16.mxu0 0
    %420 = vmatpush1.bf16.xpose.msra.mxu0 0
    %421 = vmatprep.subr.bf16.mxu0 0
    %422 = vmatpush1.bf16.xpose.msra.mxu0 0
    %423 = vmatprep.subr.bf16.mxu0 0
    %424 = vmatpush1.bf16.xpose.msra.mxu0 0
    %425 = vmatprep.subr.bf16.mxu0 0
    %426 = vmatpush1.bf16.xpose.msra.mxu0 0
    %427 = vmatprep.subr.bf16.mxu0 0
    %428 = vmatpush1.bf16.xpose.msra.mxu0 0
    %429 = vmatprep.subr.bf16.mxu0 0
    %430 = vmatpush1.bf16.xpose.msra.mxu0 0
    %431 = vmatprep.subr.bf16.mxu0 0
    %432 = vmatpush1.bf16.xpose.msra.mxu0 0
    %433 = vmatprep.subr.bf16.mxu0 0
    %434 = vmatpush1.bf16.xpose.msra.mxu0 0
    %435 = vmatprep.subr.bf16.mxu0 0
    %436 = vmatpush1.bf16.xpose.msra.mxu0 0
    %437 = vmatprep.subr.bf16.mxu0 0
    %438 = vmatpush1.bf16.xpose.msra.mxu0 0
    %439 = vmatprep.subr.bf16.mxu0 0
    %440 = vmatpush1.bf16.xpose.msra.mxu0 0
    %441 = vmatprep.subr.bf16.mxu0 0
    %442 = vmatpush1.bf16.xpose.msra.mxu0 0
    %443 = vmatprep.subr.bf16.mxu0 0
    %444 = vmatpush1.bf16.xpose.msra.mxu0 0
    %445 = vmatprep.subr.bf16.mxu0 0
    %446 = vmatpush1.bf16.xpose.msra.mxu0 0
    %447 = vmatprep.subr.bf16.mxu0 0
    %448 = vmatpush1.bf16.xpose.msra.mxu0 0
    %449 = vmatprep.mubr.bf16.mxu0 0
    %450 = vmatmul.mubr.bf16.gmra.mrb[0].mxu0 %v412
    %v451 = vpop.f32.mrb[0].mxu0
    %v452 = vadd.f32 %v355, %v451
    %v453 = vpop.f32.mrb[0].mxu0
    %v454 = vpop.f32.mrb[0].mxu0
    %v455 = vpop.f32.mrb[0].mxu0
    %456 = vdwg.mxu0
    %vm457 = vcmask 64512
    %v458 = vsel %vm457, %v403, -inf
    %459 = vmax.xlane.f32.xlu0 %v458
    %v460 = vpop.xlane.xlu0 %459
    %v461 = vsel %vm457, %v452, -inf
    %462 = vmax.xlane.f32.xlu0 %v461
    %v463 = vpop.xlane.xlu0 %462
    %v464 = vsub.f32 %v403, %v460
    %v465 = vsub.f32 %v452, %v463
    %v466 = vmul.f32 %v464, 1.442695
    %v467 = vpow.pop %v466
    %v468 = vmul.f32 %v465, 1.442695
    %v469 = vpow.pop %v468
    %v470 = vsel %vm457, %v467, 0.0
    %471 = vadd.xlane.f32.xlu0 %v470
    %v472 = vpop.xlane.xlu0 %471
    %v473 = vsel %vm457, %v469, 0.0
    %474 = vadd.xlane.f32.xlu0 %v473
    %v475 = vpop.xlane.xlu0 %474
    %v476 = vrcp.pop %v472
    %v477 = vmul.f32 %v467, %v476
    %v478 = vrcp.pop %v475
    %v479 = vmul.f32 %v469, %v478
    %v480 = vpack.c.bf16 %v477, %v477
    %v481 = vpack.c.bf16 %v479, %v479
    %482 = vrot.lane.b32.xlu0 %v323, 64
    %v483 = vpop.permute.xlu0 %482
    %v485 = vsel %vm457, %v480, 0
    %vm487 = vcmask 1043456
    %v489 = vsel %vm487, %v483, 0
    %491 = vmatprep.subr.bf16.mxu0 0
    %492 = vmatpush1.bf16.msra.mxu0 %v489
    %493 = vmatprep.subr.bf16.mxu0 0
    %494 = vmatpush1.bf16.msra.mxu0 0
    %495 = vmatprep.subr.bf16.mxu0 0
    %496 = vmatpush1.bf16.msra.mxu0 0
    %497 = vmatprep.subr.bf16.mxu0 0
    %498 = vmatpush1.bf16.msra.mxu0 0
    %499 = vmatprep.subr.bf16.mxu0 0
    %500 = vmatpush1.bf16.msra.mxu0 0
    %501 = vmatprep.subr.bf16.mxu0 0
    %502 = vmatpush1.bf16.msra.mxu0 0
    %503 = vmatprep.subr.bf16.mxu0 0
    %504 = vmatpush1.bf16.msra.mxu0 0
    %505 = vmatprep.subr.bf16.mxu0 0
    %506 = vmatpush1.bf16.msra.mxu0 0
    %507 = vmatprep.subr.bf16.mxu0 0
    %508 = vmatpush1.bf16.msra.mxu0 0
    %509 = vmatprep.subr.bf16.mxu0 0
    %510 = vmatpush1.bf16.msra.mxu0 0
    %511 = vmatprep.subr.bf16.mxu0 0
    %512 = vmatpush1.bf16.msra.mxu0 0
    %513 = vmatprep.subr.bf16.mxu0 0
    %514 = vmatpush1.bf16.msra.mxu0 0
    %515 = vmatprep.subr.bf16.mxu0 0
    %516 = vmatpush1.bf16.msra.mxu0 0
    %517 = vmatprep.subr.bf16.mxu0 0
    %518 = vmatpush1.bf16.msra.mxu0 0
    %519 = vmatprep.subr.bf16.mxu0 0
    %520 = vmatpush1.bf16.msra.mxu0 0
    %521 = vmatprep.subr.bf16.mxu0 0
    %522 = vmatpush1.bf16.msra.mxu0 0
    %523 = vmatprep.mubr.bf16.mxu0 0
    %524 = vmatmul.mubr.bf16.gmra.mrb[0].mxu0 %v485
    %v525 = vpop.f32.mrb[0].mxu0
    %v526 = vadd.f32 0.0, %v525
    %v527 = vpop.f32.mrb[0].mxu0
    %v528 = vpop.f32.mrb[0].mxu0
    %v529 = vpop.f32.mrb[0].mxu0
    %530 = vdwg.mxu0
    %531 = vrot.lane.b32.xlu0 %v324, 64
    %v532 = vpop.permute.xlu0 %531
    %v534 = vsel %vm457, %v481, 0
    %v537 = vsel %vm487, %v532, 0
    %539 = vmatprep.subr.bf16.mxu0 0
    %540 = vmatpush1.bf16.msra.mxu0 %v537
    %541 = vmatprep.subr.bf16.mxu0 0
    %542 = vmatpush1.bf16.msra.mxu0 0
    %543 = vmatprep.subr.bf16.mxu0 0
    %544 = vmatpush1.bf16.msra.mxu0 0
    %545 = vmatprep.subr.bf16.mxu0 0
    %546 = vmatpush1.bf16.msra.mxu0 0
    %547 = vmatprep.subr.bf16.mxu0 0
    %548 = vmatpush1.bf16.msra.mxu0 0
    %549 = vmatprep.subr.bf16.mxu0 0
    %550 = vmatpush1.bf16.msra.mxu0 0
    %551 = vmatprep.subr.bf16.mxu0 0
    %552 = vmatpush1.bf16.msra.mxu0 0
    %553 = vmatprep.subr.bf16.mxu0 0
    %554 = vmatpush1.bf16.msra.mxu0 0
    %555 = vmatprep.subr.bf16.mxu0 0
    %556 = vmatpush1.bf16.msra.mxu0 0
    %557 = vmatprep.subr.bf16.mxu0 0
    %558 = vmatpush1.bf16.msra.mxu0 0
    %559 = vmatprep.subr.bf16.mxu0 0
    %560 = vmatpush1.bf16.msra.mxu0 0
    %561 = vmatprep.subr.bf16.mxu0 0
    %562 = vmatpush1.bf16.msra.mxu0 0
    %563 = vmatprep.subr.bf16.mxu0 0
    %564 = vmatpush1.bf16.msra.mxu0 0
    %565 = vmatprep.subr.bf16.mxu0 0
    %566 = vmatpush1.bf16.msra.mxu0 0
    %567 = vmatprep.subr.bf16.mxu0 0
    %568 = vmatpush1.bf16.msra.mxu0 0
    %569 = vmatprep.subr.bf16.mxu0 0
    %570 = vmatpush1.bf16.msra.mxu0 0
    %571 = vmatprep.mubr.bf16.mxu0 0
    %572 = vmatmul.mubr.bf16.gmra.mrb[0].mxu0 %v534
    %v573 = vpop.f32.mrb[0].mxu0
    %v574 = vadd.f32 0.0, %v573
    %v575 = vpop.f32.mrb[0].mxu0
    %v576 = vpop.f32.mrb[0].mxu0
    %v577 = vpop.f32.mrb[0].mxu0
    %578 = vdwg.mxu0
    %579 = vrot.lane.b32.xlu0 %v323, 112
    %v580 = vpop.permute.xlu0 %579
    %581 = vrot.lane.b32.xlu0 %v323, 80
    %v582 = vpop.permute.xlu0 %581
    %v584 = vsel %vm361, %v580, 0
    %v587 = vsel %vm361, %v582, 0
    %589 = vmatprep.subr.bf16.mxu0 0
    %590 = vmatpush1.bf16.xpose.msra.mxu0 %v587
    %591 = vmatprep.subr.bf16.mxu0 0
    %592 = vmatpush1.bf16.xpose.msra.mxu0 0
    %593 = vmatprep.subr.bf16.mxu0 0
    %594 = vmatpush1.bf16.xpose.msra.mxu0 0
    %595 = vmatprep.subr.bf16.mxu0 0
    %596 = vmatpush1.bf16.xpose.msra.mxu0 0
    %597 = vmatprep.subr.bf16.mxu0 0
    %598 = vmatpush1.bf16.xpose.msra.mxu0 0
    %599 = vmatprep.subr.bf16.mxu0 0
    %600 = vmatpush1.bf16.xpose.msra.mxu0 0
    %601 = vmatprep.subr.bf16.mxu0 0
    %602 = vmatpush1.bf16.xpose.msra.mxu0 0
    %603 = vmatprep.subr.bf16.mxu0 0
    %604 = vmatpush1.bf16.xpose.msra.mxu0 0
    %605 = vmatprep.subr.bf16.mxu0 0
    %606 = vmatpush1.bf16.xpose.msra.mxu0 0
    %607 = vmatprep.subr.bf16.mxu0 0
    %608 = vmatpush1.bf16.xpose.msra.mxu0 0
    %609 = vmatprep.subr.bf16.mxu0 0
    %610 = vmatpush1.bf16.xpose.msra.mxu0 0
    %611 = vmatprep.subr.bf16.mxu0 0
    %612 = vmatpush1.bf16.xpose.msra.mxu0 0
    %613 = vmatprep.subr.bf16.mxu0 0
    %614 = vmatpush1.bf16.xpose.msra.mxu0 0
    %615 = vmatprep.subr.bf16.mxu0 0
    %616 = vmatpush1.bf16.xpose.msra.mxu0 0
    %617 = vmatprep.subr.bf16.mxu0 0
    %618 = vmatpush1.bf16.xpose.msra.mxu0 0
    %619 = vmatprep.subr.bf16.mxu0 0
    %620 = vmatpush1.bf16.xpose.msra.mxu0 0
    %621 = vmatprep.mubr.bf16.mxu0 0
    %622 = vmatmul.mubr.bf16.gmra.mrb[0].mxu0 %v584
    %v623 = vpop.f32.mrb[0].mxu0
    %v624 = vadd.f32 %v351, %v623
    %v625 = vpop.f32.mrb[0].mxu0
    %v626 = vpop.f32.mrb[0].mxu0
    %v627 = vpop.f32.mrb[0].mxu0
    %628 = vdwg.mxu0
    %629 = vrot.lane.b32.xlu0 %v324, 112
    %v630 = vpop.permute.xlu0 %629
    %631 = vrot.lane.b32.xlu0 %v324, 80
    %v632 = vpop.permute.xlu0 %631
    %v634 = vsel %vm361, %v630, 0
    %v637 = vsel %vm361, %v632, 0
    %639 = vmatprep.subr.bf16.mxu0 0
    %640 = vmatpush1.bf16.xpose.msra.mxu0 %v637
    %641 = vmatprep.subr.bf16.mxu0 0
    %642 = vmatpush1.bf16.xpose.msra.mxu0 0
    %643 = vmatprep.subr.bf16.mxu0 0
    %644 = vmatpush1.bf16.xpose.msra.mxu0 0
    %645 = vmatprep.subr.bf16.mxu0 0
    %646 = vmatpush1.bf16.xpose.msra.mxu0 0
    %647 = vmatprep.subr.bf16.mxu0 0
    %648 = vmatpush1.bf16.xpose.msra.mxu0 0
    %649 = vmatprep.subr.bf16.mxu0 0
    %650 = vmatpush1.bf16.xpose.msra.mxu0 0
    %651 = vmatprep.subr.bf16.mxu0 0
    %652 = vmatpush1.bf16.xpose.msra.mxu0 0
    %653 = vmatprep.subr.bf16.mxu0 0
    %654 = vmatpush1.bf16.xpose.msra.mxu0 0
    %655 = vmatprep.subr.bf16.mxu0 0
    %656 = vmatpush1.bf16.xpose.msra.mxu0 0
    %657 = vmatprep.subr.bf16.mxu0 0
    %658 = vmatpush1.bf16.xpose.msra.mxu0 0
    %659 = vmatprep.subr.bf16.mxu0 0
    %660 = vmatpush1.bf16.xpose.msra.mxu0 0
    %661 = vmatprep.subr.bf16.mxu0 0
    %662 = vmatpush1.bf16.xpose.msra.mxu0 0
    %663 = vmatprep.subr.bf16.mxu0 0
    %664 = vmatpush1.bf16.xpose.msra.mxu0 0
    %665 = vmatprep.subr.bf16.mxu0 0
    %666 = vmatpush1.bf16.xpose.msra.mxu0 0
    %667 = vmatprep.subr.bf16.mxu0 0
    %668 = vmatpush1.bf16.xpose.msra.mxu0 0
    %669 = vmatprep.subr.bf16.mxu0 0
    %670 = vmatpush1.bf16.xpose.msra.mxu0 0
    %671 = vmatprep.mubr.bf16.mxu0 0
    %672 = vmatmul.mubr.bf16.gmra.mrb[0].mxu0 %v634
    %v673 = vpop.f32.mrb[0].mxu0
    %v674 = vadd.f32 %v355, %v673
    %v675 = vpop.f32.mrb[0].mxu0
    %v676 = vpop.f32.mrb[0].mxu0
    %v677 = vpop.f32.mrb[0].mxu0
    %678 = vdwg.mxu0
    %v679 = vsel %vm457, %v624, -inf
    %680 = vmax.xlane.f32.xlu0 %v679
    %v681 = vpop.xlane.xlu0 %680
    %v682 = vsel %vm457, %v674, -inf
    %683 = vmax.xlane.f32.xlu0 %v682
    %v684 = vpop.xlane.xlu0 %683
    %v685 = vsub.f32 %v624, %v681
    %v686 = vsub.f32 %v674, %v684
    %v687 = vmul.f32 %v685, 1.442695
    %v688 = vpow.pop %v687
    %v689 = vmul.f32 %v686, 1.442695
    %v690 = vpow.pop %v689
    %v691 = vsel %vm457, %v688, 0.0
    %692 = vadd.xlane.f32.xlu0 %v691
    %v693 = vpop.xlane.xlu0 %692
    %v694 = vsel %vm457, %v690, 0.0
    %695 = vadd.xlane.f32.xlu0 %v694
    %v696 = vpop.xlane.xlu0 %695
    %v697 = vrcp.pop %v693
    %v698 = vmul.f32 %v688, %v697
    %v699 = vrcp.pop %v696
    %v700 = vmul.f32 %v690, %v699
    %v701 = vpack.c.bf16 %v698, %v698
    %v702 = vpack.c.bf16 %v700, %v700
    %703 = vrot.lane.b32.xlu0 %v323, 48
    %v704 = vpop.permute.xlu0 %703
    %v706 = vsel %vm457, %v701, 0
    %v709 = vsel %vm487, %v704, 0
    %711 = vmatprep.subr.bf16.mxu0 0
    %712 = vmatpush1.bf16.msra.mxu0 %v709
    %713 = vmatprep.subr.bf16.mxu0 0
    %714 = vmatpush1.bf16.msra.mxu0 0
    %715 = vmatprep.subr.bf16.mxu0 0
    %716 = vmatpush1.bf16.msra.mxu0 0
    %717 = vmatprep.subr.bf16.mxu0 0
    %718 = vmatpush1.bf16.msra.mxu0 0
    %719 = vmatprep.subr.bf16.mxu0 0
    %720 = vmatpush1.bf16.msra.mxu0 0
    %721 = vmatprep.subr.bf16.mxu0 0
    %722 = vmatpush1.bf16.msra.mxu0 0
    %723 = vmatprep.subr.bf16.mxu0 0
    %724 = vmatpush1.bf16.msra.mxu0 0
    %725 = vmatprep.subr.bf16.mxu0 0
    %726 = vmatpush1.bf16.msra.mxu0 0
    %727 = vmatprep.subr.bf16.mxu0 0
    %728 = vmatpush1.bf16.msra.mxu0 0
    %729 = vmatprep.subr.bf16.mxu0 0
    %730 = vmatpush1.bf16.msra.mxu0 0
    %731 = vmatprep.subr.bf16.mxu0 0
    %732 = vmatpush1.bf16.msra.mxu0 0
    %733 = vmatprep.subr.bf16.mxu0 0
    %734 = vmatpush1.bf16.msra.mxu0 0
    %735 = vmatprep.subr.bf16.mxu0 0
    %736 = vmatpush1.bf16.msra.mxu0 0
    %737 = vmatprep.subr.bf16.mxu0 0
    %738 = vmatpush1.bf16.msra.mxu0 0
    %739 = vmatprep.subr.bf16.mxu0 0
    %740 = vmatpush1.bf16.msra.mxu0 0
    %741 = vmatprep.subr.bf16.mxu0 0
    %742 = vmatpush1.bf16.msra.mxu0 0
    %743 = vmatprep.mubr.bf16.mxu0 0
    %744 = vmatmul.mubr.bf16.gmra.mrb[0].mxu0 %v706
    %v745 = vpop.f32.mrb[0].mxu0
    %v746 = vadd.f32 0.0, %v745
    %v747 = vpop.f32.mrb[0].mxu0
    %v748 = vpop.f32.mrb[0].mxu0
    %v749 = vpop.f32.mrb[0].mxu0
    %750 = vdwg.mxu0
    %751 = vrot.lane.b32.xlu0 %v324, 48
    %v752 = vpop.permute.xlu0 %751
    %v754 = vsel %vm457, %v702, 0
    %v757 = vsel %vm487, %v752, 0
    %759 = vmatprep.subr.bf16.mxu0 0
    %760 = vmatpush1.bf16.msra.mxu0 %v757
    %761 = vmatprep.subr.bf16.mxu0 0
    %762 = vmatpush1.bf16.msra.mxu0 0
    %763 = vmatprep.subr.bf16.mxu0 0
    %764 = vmatpush1.bf16.msra.mxu0 0
    %765 = vmatprep.subr.bf16.mxu0 0
    %766 = vmatpush1.bf16.msra.mxu0 0
    %767 = vmatprep.subr.bf16.mxu0 0
    %768 = vmatpush1.bf16.msra.mxu0 0
    %769 = vmatprep.subr.bf16.mxu0 0
    %770 = vmatpush1.bf16.msra.mxu0 0
    %771 = vmatprep.subr.bf16.mxu0 0
    %772 = vmatpush1.bf16.msra.mxu0 0
    %773 = vmatprep.subr.bf16.mxu0 0
    %774 = vmatpush1.bf16.msra.mxu0 0
    %775 = vmatprep.subr.bf16.mxu0 0
    %776 = vmatpush1.bf16.msra.mxu0 0
    %777 = vmatprep.subr.bf16.mxu0 0
    %778 = vmatpush1.bf16.msra.mxu0 0
    %779 = vmatprep.subr.bf16.mxu0 0
    %780 = vmatpush1.bf16.msra.mxu0 0
    %781 = vmatprep.subr.bf16.mxu0 0
    %782 = vmatpush1.bf16.msra.mxu0 0
    %783 = vmatprep.subr.bf16.mxu0 0
    %784 = vmatpush1.bf16.msra.mxu0 0
    %785 = vmatprep.subr.bf16.mxu0 0
    %786 = vmatpush1.bf16.msra.mxu0 0
    %787 = vmatprep.subr.bf16.mxu0 0
    %788 = vmatpush1.bf16.msra.mxu0 0
    %789 = vmatprep.subr.bf16.mxu0 0
    %790 = vmatpush1.bf16.msra.mxu0 0
    %791 = vmatprep.mubr.bf16.mxu0 0
    %792 = vmatmul.mubr.bf16.gmra.mrb[0].mxu0 %v754
    %v793 = vpop.f32.mrb[0].mxu0
    %v794 = vadd.f32 0.0, %v793
    %v795 = vpop.f32.mrb[0].mxu0
    %v796 = vpop.f32.mrb[0].mxu0
    %v797 = vpop.f32.mrb[0].mxu0
    %798 = vdwg.mxu0
    %801 = vrot.lane.b32.xlu0 %v746, 16
    %v802 = vpop.permute.xlu0 %801
    %803 = vrot.lane.b32.xlu0 %v794, 16
    %v804 = vpop.permute.xlu0 %803
    %v807 = vsel %vm361, %v526, %v802
    %v808 = vsel %vm361, %v574, %v804
    %s809 = scalar_lea.vmem [#allocation5], 128
    %v810 = vld [vmem:[%s809] sm:$0xf]
    %v811 = vld [vmem:[%s809 + $0x4] sm:$0xf]
    %v812 = vld [vmem:[%s809 + $0x8] sm:$0xf]
    %v813 = vld [vmem:[%s809 + $0xc] sm:$0xf]
    %v814 = vpack.c.bf16 %v808, %v807
    %v815 = vld [vmem:[#allocation7 + $0x15] sm:$0x1]
    %v816 = vlaneseq
    %v817 = vshrl.u32 %v816, 7
    %v818 = vsub.s32 0, %v817
    %v819 = vrot.slane %v815, %v818
    %v824 = vunpack.c.l.b16 %v810
    %v825 = vunpack.c.l.b16 %v811
    %v826 = vunpack.c.l.b16 %v812
    %v827 = vunpack.c.l.b16 %v813
    %v828 = vpack.c.b16 %v825, %v824
    %v829 = vpack.c.b16 %v827, %v826
    %v833 = vsel %vm214, %v814, 0
    %835 = vmatprep.subr.bf16.mxu0 0
    %836 = vmatpush1.bf16.msra.mxu0 %v828
    %837 = vmatprep.subr.bf16.mxu0 0
    %838 = vmatpush1.bf16.msra.mxu0 %v829
    %839 = vmatprep.subr.bf16.mxu0 0
    %840 = vmatpush1.bf16.msra.mxu0 0
    %841 = vmatprep.subr.bf16.mxu0 0
    %842 = vmatpush1.bf16.msra.mxu0 0
    %843 = vmatprep.subr.bf16.mxu0 0
    %844 = vmatpush1.bf16.msra.mxu0 0
    %845 = vmatprep.subr.bf16.mxu0 0
    %846 = vmatpush1.bf16.msra.mxu0 0
    %847 = vmatprep.subr.bf16.mxu0 0
    %848 = vmatpush1.bf16.msra.mxu0 0
    %849 = vmatprep.subr.bf16.mxu0 0
    %850 = vmatpush1.bf16.msra.mxu0 0
    %851 = vmatprep.subr.bf16.mxu0 0
    %852 = vmatpush1.bf16.msra.mxu0 0
    %853 = vmatprep.subr.bf16.mxu0 0
    %854 = vmatpush1.bf16.msra.mxu0 0
    %855 = vmatprep.subr.bf16.mxu0 0
    %856 = vmatpush1.bf16.msra.mxu0 0
    %857 = vmatprep.subr.bf16.mxu0 0
    %858 = vmatpush1.bf16.msra.mxu0 0
    %859 = vmatprep.subr.bf16.mxu0 0
    %860 = vmatpush1.bf16.msra.mxu0 0
    %861 = vmatprep.subr.bf16.mxu0 0
    %862 = vmatpush1.bf16.msra.mxu0 0
    %863 = vmatprep.subr.bf16.mxu0 0
    %864 = vmatpush1.bf16.msra.mxu0 0
    %865 = vmatprep.subr.bf16.mxu0 0
    %866 = vmatpush1.bf16.msra.mxu0 0
    %867 = vmatprep.mubr.bf16.mxu0 0
    %868 = vmatmul.mubr.bf16.gmra.mrb[0].mxu0 %v833
    %v869 = vpop.f32.mrb[0].mxu0
    %v870 = vadd.f32 %v819, %v869
    %v871 = vpop.f32.mrb[0].mxu0
    %v872 = vpop.f32.mrb[0].mxu0
    %v873 = vadd.f32 %v819, %v872
    %v874 = vpop.f32.mrb[0].mxu0
    %875 = vdwg.mxu0
    %v876 = vadd.f32 %v870, %v252
    %v877 = vadd.f32 %v873, %v253
    %v878 = vld [vmem:[#allocation7 + $0x16] sm:$0x1]
    %v879 = vld [vmem:[#allocation7 + $0x17] sm:$0x1]
    %v880 = vsel %vm214, %v876, 0.0
    %881 = vadd.xlane.f32.xlu0 %v880
    %v882 = vpop.xlane.xlu0 %881
    %v883 = vsel %vm214, %v877, 0.0
    %884 = vadd.xlane.f32.xlu0 %v883
    %v885 = vpop.xlane.xlu0 %884
    %v886 = vmul.f32 %v882, %v221
    %v887 = vmul.f32 %v885, %v221
    %v888 = vsub.f32 %v876, %v886
    %v889 = vsub.f32 %v877, %v887
    %v890 = vmul.f32 %v888, %v888
    %v891 = vmul.f32 %v889, %v889
    %v892 = vsel %vm214, %v890, 0.0
    %893 = vadd.xlane.f32.xlu0 %v892
    %v894 = vpop.xlane.xlu0 %893
    %v895 = vsel %vm214, %v891, 0.0
    %896 = vadd.xlane.f32.xlu0 %v895
    %v897 = vpop.xlane.xlu0 %896
    %v898 = vmul.f32 %v894, %v221
    %v899 = vmul.f32 %v897, %v221
    %v900 = vadd.f32 %v898, 1e-12
    %v901 = vadd.f32 %v899, 1e-12
    %v902 = vrsqrt.pop %v900
    %v903 = vrsqrt.pop %v901
    %v904 = vmul.f32 %v888, %v902
    %v905 = vmul.f32 %v889, %v903
    %v906 = vlaneseq
    %v907 = vshrl.u32 %v906, 7
    %v908 = vsub.s32 0, %v907
    %v909 = vrot.slane %v878, %v908
    %v910 = vmul.f32 %v904, %v909
    %v911 = vmul.f32 %v905, %v909
    %v912 = vlaneseq
    %v913 = vshrl.u32 %v912, 7
    %v914 = vsub.s32 0, %v913
    %v915 = vrot.slane %v879, %v914
    %v916 = vadd.f32 %v910, %v915
    %v917 = vadd.f32 %v911, %v915
    %s918 = scalar_lea.vmem [#allocation5], 192
    %v919 = vld [vmem:[%s918] sm:$0xf]
    %v920 = vld [vmem:[%s918 + $0x4] sm:$0xf]
    %v921 = vld [vmem:[%s918 + $0x8] sm:$0xf]
    %v922 = vld [vmem:[%s918 + $0xc] sm:$0xf]
    %v923 = vpack.c.bf16 %v917, %v916
    %v924 = vld [vmem:[#allocation7 + $0x18] sm:$0x1]
    %v925 = vlaneseq
    %v926 = vshrl.u32 %v925, 7
    %v927 = vsub.s32 0, %v926
    %v928 = vrot.slane %v924, %v927
    %v933 = vunpack.c.l.b16 %v919
    %v934 = vunpack.c.l.b16 %v920
    %v935 = vunpack.c.l.b16 %v921
    %v936 = vunpack.c.l.b16 %v922
    %v937 = vpack.c.b16 %v934, %v933
    %v938 = vpack.c.b16 %v936, %v935
    %v942 = vsel %vm214, %v923, 0
    %944 = vmatprep.subr.bf16.mxu0 0
    %945 = vmatpush1.bf16.msra.mxu0 %v937
    %946 = vmatprep.subr.bf16.mxu0 0
    %947 = vmatpush1.bf16.msra.mxu0 %v938
    %948 = vmatprep.subr.bf16.mxu0 0
    %949 = vmatpush1.bf16.msra.mxu0 0
    %950 = vmatprep.subr.bf16.mxu0 0
    %951 = vmatpush1.bf16.msra.mxu0 0
    %952 = vmatprep.subr.bf16.mxu0 0
    %953 = vmatpush1.bf16.msra.mxu0 0
    %954 = vmatprep.subr.bf16.mxu0 0
    %955 = vmatpush1.bf16.msra.mxu0 0
    %956 = vmatprep.subr.bf16.mxu0 0
    %957 = vmatpush1.bf16.msra.mxu0 0
    %958 = vmatprep.subr.bf16.mxu0 0
    %959 = vmatpush1.bf16.msra.mxu0 0
    %960 = vmatprep.subr.bf16.mxu0 0
    %961 = vmatpush1.bf16.msra.mxu0 0
    %962 = vmatprep.subr.bf16.mxu0 0
    %963 = vmatpush1.bf16.msra.mxu0 0
    %964 = vmatprep.subr.bf16.mxu0 0
    %965 = vmatpush1.bf16.msra.mxu0 0
    %966 = vmatprep.subr.bf16.mxu0 0
    %967 = vmatpush1.bf16.msra.mxu0 0
    %968 = vmatprep.subr.bf16.mxu0 0
    %969 = vmatpush1.bf16.msra.mxu0 0
    %970 = vmatprep.subr.bf16.mxu0 0
    %971 = vmatpush1.bf16.msra.mxu0 0
    %972 = vmatprep.subr.bf16.mxu0 0
    %973 = vmatpush1.bf16.msra.mxu0 0
    %974 = vmatprep.subr.bf16.mxu0 0
    %975 = vmatpush1.bf16.msra.mxu0 0
    %976 = vmatprep.mubr.bf16.mxu0 0
    %977 = vmatmul.mubr.bf16.gmra.mrb[0].mxu0 %v942
    %v978 = vpop.f32.mrb[0].mxu0
    %v979 = vadd.f32 %v928, %v978
    %v980 = vpop.f32.mrb[0].mxu0
    %v981 = vpop.f32.mrb[0].mxu0
    %v982 = vadd.f32 %v928, %v981
    %v983 = vpop.f32.mrb[0].mxu0
    %984 = vdwg.mxu0
    %v985 = vmul.f32 %v979, %v979
    %v986 = vmul.f32 %v982, %v982
    %v987 = vmul.f32 %v979, %v985
    %v988 = vmul.f32 %v982, %v986
    %v989 = vmul.f32 %v987, 0.044715
    %v990 = vmul.f32 %v988, 0.044715
    %v991 = vadd.f32 %v979, %v989
    %v992 = vadd.f32 %v982, %v990
    %v993 = vmul.f32 %v991, 0.7978846
    %v994 = vmul.f32 %v992, 0.7978846
    %v995 = vtanh.pop %v993
    %v996 = vtanh.pop %v994
    %v997 = vadd.f32 %v995, 1.0
    %v998 = vadd.f32 %v996, 1.0
    %v999 = vmul.f32 %v997, 0.5
    %v1000 = vmul.f32 %v998, 0.5
    %v1001 = vmul.f32 %v979, %v999
    %v1002 = vmul.f32 %v982, %v1000
    %s1003 = scalar_lea.vmem [#allocation5], 256
    %v1004 = vld [vmem:[%s1003] sm:$0xf]
    %v1005 = vld [vmem:[%s1003 + $0x4] sm:$0xf]
    %v1006 = vld [vmem:[%s1003 + $0x8] sm:$0xf]
    %v1007 = vld [vmem:[%s1003 + $0xc] sm:$0xf]
    %v1008 = vld [vmem:[%s1003 + $0x10] sm:$0xf]
    %v1009 = vld [vmem:[%s1003 + $0x14] sm:$0xf]
    %v1010 = vld [vmem:[%s1003 + $0x18] sm:$0xf]
    %v1011 = vld [vmem:[%s1003 + $0x1c] sm:$0xf]
    %v1012 = vpack.c.bf16 %v1002, %v1001
    %v1013 = vld [vmem:[#allocation7 + $0x19] sm:$0x1]
    %v1014 = vlaneseq
    %v1015 = vshrl.u32 %v1014, 7
    %v1016 = vsub.s32 0, %v1015
    %v1017 = vrot.slane %v1013, %v1016
    %v1026 = vunpack.c.l.b16 %v1004
    %v1027 = vunpack.c.l.b16 %v1005
    %v1028 = vunpack.c.l.b16 %v1006
    %v1029 = vunpack.c.l.b16 %v1007
    %v1030 = vunpack.c.l.b16 %v1008
    %v1031 = vunpack.c.l.b16 %v1009
    %v1032 = vunpack.c.l.b16 %v1010
    %v1033 = vunpack.c.l.b16 %v1011
    %v1034 = vpack.c.b16 %v1027, %v1026
    %v1035 = vpack.c.b16 %v1029, %v1028
    %v1036 = vpack.c.b16 %v1031, %v1030
    %v1037 = vpack.c.b16 %v1033, %v1032
    %vm1042 = vcmask 523264
    %v1044 = vsel %vm1042, %v1012, 0
    %1046 = vmatprep.subr.bf16.mxu0 0
    %1047 = vmatpush1.bf16.msra.mxu0 %v1034
    %1048 = vmatprep.subr.bf16.mxu0 0
    %1049 = vmatpush1.bf16.msra.mxu0 %v1035
    %1050 = vmatprep.subr.bf16.mxu0 0
    %1051 = vmatpush1.bf16.msra.mxu0 %v1036
    %1052 = vmatprep.subr.bf16.mxu0 0
    %1053 = vmatpush1.bf16.msra.mxu0 %v1037
    %1054 = vmatprep.subr.bf16.mxu0 0
    %1055 = vmatpush1.bf16.msra.mxu0 0
    %1056 = vmatprep.subr.bf16.mxu0 0
    %1057 = vmatpush1.bf16.msra.mxu0 0
    %1058 = vmatprep.subr.bf16.mxu0 0
    %1059 = vmatpush1.bf16.msra.mxu0 0
    %1060 = vmatprep.subr.bf16.mxu0 0
    %1061 = vmatpush1.bf16.msra.mxu0 0
    %1062 = vmatprep.subr.bf16.mxu0 0
    %1063 = vmatpush1.bf16.msra.mxu0 0
    %1064 = vmatprep.subr.bf16.mxu0 0
    %1065 = vmatpush1.bf16.msra.mxu0 0
    %1066 = vmatprep.subr.bf16.mxu0 0
    %1067 = vmatpush1.bf16.msra.mxu0 0
    %1068 = vmatprep.subr.bf16.mxu0 0
    %1069 = vmatpush1.bf16.msra.mxu0 0
    %1070 = vmatprep.subr.bf16.mxu0 0
    %1071 = vmatpush1.bf16.msra.mxu0 0
    %1072 = vmatprep.subr.bf16.mxu0 0
    %1073 = vmatpush1.bf16.msra.mxu0 0
    %1074 = vmatprep.subr.bf16.mxu0 0
    %1075 = vmatpush1.bf16.msra.mxu0 0
    %1076 = vmatprep.subr.bf16.mxu0 0
    %1077 = vmatpush1.bf16.msra.mxu0 0
    %1078 = vmatprep.mubr.bf16.mxu0 0
    %1079 = vmatmul.mubr.bf16.gmra.mrb[0].mxu0 %v1044
    %v1080 = vpop.f32.mrb[0].mxu0
    %v1081 = vadd.f32 %v1017, %v1080
    %v1082 = vpop.f32.mrb[0].mxu0
    %v1083 = vpop.f32.mrb[0].mxu0
    %v1084 = vadd.f32 %v1017, %v1083
    %v1085 = vpop.f32.mrb[0].mxu0
    %1086 = vdwg.mxu0
    %v1087 = vadd.f32 %v1081, %v916
    %v1088 = vadd.f32 %v1084, %v917
    %v1089 = vld [vmem:[#allocation7 + $0x1a] sm:$0x1]
    %v1090 = vld [vmem:[#allocation7 + $0x1b] sm:$0x1]
    %v1091 = vsel %vm214, %v1087, 0.0
    %1092 = vadd.xlane.f32.xlu0 %v1091
    %v1093 = vpop.xlane.xlu0 %1092
    %v1094 = vsel %vm214, %v1088, 0.0
    %1095 = vadd.xlane.f32.xlu0 %v1094
    %v1096 = vpop.xlane.xlu0 %1095
    %v1097 = vmul.f32 %v1093, %v221
    %v1098 = vmul.f32 %v1096, %v221
    %v1099 = vsub.f32 %v1087, %v1097
    %v1100 = vsub.f32 %v1088, %v1098
    %v1101 = vmul.f32 %v1099, %v1099
    %v1102 = vmul.f32 %v1100, %v1100
    %v1103 = vsel %vm214, %v1101, 0.0
    %1104 = vadd.xlane.f32.xlu0 %v1103
    %v1105 = vpop.xlane.xlu0 %1104
    %v1106 = vsel %vm214, %v1102, 0.0
    %1107 = vadd.xlane.f32.xlu0 %v1106
    %v1108 = vpop.xlane.xlu0 %1107
    %v1109 = vmul.f32 %v1105, %v221
    %v1110 = vmul.f32 %v1108, %v221
    %v1111 = vadd.f32 %v1109, 1e-12
    %v1112 = vadd.f32 %v1110, 1e-12
    %v1113 = vrsqrt.pop %v1111
    %v1114 = vrsqrt.pop %v1112
    %v1115 = vmul.f32 %v1099, %v1113
    %v1116 = vmul.f32 %v1100, %v1114
    %v1117 = vlaneseq
    %v1118 = vshrl.u32 %v1117, 7
    %v1119 = vsub.s32 0, %v1118
    %v1120 = vrot.slane %v1089, %v1119
    %v1121 = vmul.f32 %v1115, %v1120
    %v1122 = vmul.f32 %v1116, %v1120
    %v1123 = vlaneseq
    %v1124 = vshrl.u32 %v1123, 7
    %v1125 = vsub.s32 0, %v1124
    %v1126 = vrot.slane %v1090, %v1125
    %v1127 = vadd.f32 %v1121, %v1126
    %v1128 = vadd.f32 %v1122, %v1126
    %s1129 = scalar_lea.vmem [#allocation5], 320
    %v1130 = vld [vmem:[%s1129] sm:$0xf]
    %v1131 = vld [vmem:[%s1129 + $0x4] sm:$0xf]
    %v1132 = vld [vmem:[%s1129 + $0x8] sm:$0xf]
    %v1133 = vld [vmem:[%s1129 + $0xc] sm:$0xf]
    %v1134 = vpack.c.bf16 %v1128, %v1127
    %v1135 = vld [vmem:[#allocation7 + $0x1c] sm:$0x1]
    %v1136 = vlaneseq
    %v1137 = vshrl.u32 %v1136, 7
    %v1138 = vsub.s32 0, %v1137
    %v1139 = vrot.slane %v1135, %v1138
    %v1144 = vunpack.c.l.b16 %v1130
    %v1145 = vunpack.c.l.b16 %v1131
    %v1146 = vunpack.c.l.b16 %v1132
    %v1147 = vunpack.c.l.b16 %v1133
    %v1148 = vpack.c.b16 %v1145, %v1144
    %v1149 = vpack.c.b16 %v1147, %v1146
    %v1153 = vsel %vm214, %v1134, 0
    %1155 = vmatprep.subr.bf16.mxu0 0
    %1156 = vmatpush1.bf16.msra.mxu0 %v1148
    %1157 = vmatprep.subr.bf16.mxu0 0
    %1158 = vmatpush1.bf16.msra.mxu0 %v1149
    %1159 = vmatprep.subr.bf16.mxu0 0
    %1160 = vmatpush1.bf16.msra.mxu0 0
    %1161 = vmatprep.subr.bf16.mxu0 0
    %1162 = vmatpush1.bf16.msra.mxu0 0
    %1163 = vmatprep.subr.bf16.mxu0 0
    %1164 = vmatpush1.bf16.msra.mxu0 0
    %1165 = vmatprep.subr.bf16.mxu0 0
    %1166 = vmatpush1.bf16.msra.mxu0 0
    %1167 = vmatprep.subr.bf16.mxu0 0
    %1168 = vmatpush1.bf16.msra.mxu0 0
    %1169 = vmatprep.subr.bf16.mxu0 0
    %1170 = vmatpush1.bf16.msra.mxu0 0
    %1171 = vmatprep.subr.bf16.mxu0 0
    %1172 = vmatpush1.bf16.msra.mxu0 0
    %1173 = vmatprep.subr.bf16.mxu0 0
    %1174 = vmatpush1.bf16.msra.mxu0 0
    %1175 = vmatprep.subr.bf16.mxu0 0
    %1176 = vmatpush1.bf16.msra.mxu0 0
    %1177 = vmatprep.subr.bf16.mxu0 0
    %1178 = vmatpush1.bf16.msra.mxu0 0
    %1179 = vmatprep.subr.bf16.mxu0 0
    %1180 = vmatpush1.bf16.msra.mxu0 0
    %1181 = vmatprep.subr.bf16.mxu0 0
    %1182 = vmatpush1.bf16.msra.mxu0 0
    %1183 = vmatprep.subr.bf16.mxu0 0
    %1184 = vmatpush1.bf16.msra.mxu0 0
    %1185 = vmatprep.subr.bf16.mxu0 0
    %1186 = vmatpush1.bf16.msra.mxu0 0
    %1187 = vmatprep.mubr.bf16.mxu0 0
    %1188 = vmatmul.mubr.bf16.gmra.mrb[0].mxu0 %v1153
    %v1189 = vpop.f32.mrb[0].mxu0
    %v1190 = vadd.f32 %v1139, %v1189
    %v1191 = vpop.f32.mrb[0].mxu0
    %v1192 = vpop.f32.mrb[0].mxu0
    %v1193 = vadd.f32 %v1139, %v1192
    %v1194 = vpop.f32.mrb[0].mxu0
    %1195 = vdwg.mxu0
    %v1196 = vpack.c.bf16 %v1190, %v1190
    %v1197 = vpack.c.bf16 %v1193, %v1193
    %1199 = vrot.lane.b32.xlu0 %v1196, 96
    %v1200 = vpop.permute.xlu0 %1199
    %v1202 = vsel %vm361, %v1196, 0
    %v1205 = vsel %vm361, %v1200, 0
    %1207 = vmatprep.subr.bf16.mxu0 0
    %1208 = vmatpush1.bf16.xpose.msra.mxu0 %v1205
    %1209 = vmatprep.subr.bf16.mxu0 0
    %1210 = vmatpush1.bf16.xpose.msra.mxu0 0
    %1211 = vmatprep.subr.bf16.mxu0 0
    %1212 = vmatpush1.bf16.xpose.msra.mxu0 0
    %1213 = vmatprep.subr.bf16.mxu0 0
    %1214 = vmatpush1.bf16.xpose.msra.mxu0 0
    %1215 = vmatprep.subr.bf16.mxu0 0
    %1216 = vmatpush1.bf16.xpose.msra.mxu0 0
    %1217 = vmatprep.subr.bf16.mxu0 0
    %1218 = vmatpush1.bf16.xpose.msra.mxu0 0
    %1219 = vmatprep.subr.bf16.mxu0 0
    %1220 = vmatpush1.bf16.xpose.msra.mxu0 0
    %1221 = vmatprep.subr.bf16.mxu0 0
    %1222 = vmatpush1.bf16.xpose.msra.mxu0 0
    %1223 = vmatprep.subr.bf16.mxu0 0
    %1224 = vmatpush1.bf16.xpose.msra.mxu0 0
    %1225 = vmatprep.subr.bf16.mxu0 0
    %1226 = vmatpush1.bf16.xpose.msra.mxu0 0
    %1227 = vmatprep.subr.bf16.mxu0 0
    %1228 = vmatpush1.bf16.xpose.msra.mxu0 0
    %1229 = vmatprep.subr.bf16.mxu0 0
    %1230 = vmatpush1.bf16.xpose.msra.mxu0 0
    %1231 = vmatprep.subr.bf16.mxu0 0
    %1232 = vmatpush1.bf16.xpose.msra.mxu0 0
    %1233 = vmatprep.subr.bf16.mxu0 0
    %1234 = vmatpush1.bf16.xpose.msra.mxu0 0
    %1235 = vmatprep.subr.bf16.mxu0 0
    %1236 = vmatpush1.bf16.xpose.msra.mxu0 0
    %1237 = vmatprep.subr.bf16.mxu0 0
    %1238 = vmatpush1.bf16.xpose.msra.mxu0 0
    %1239 = vmatprep.mubr.bf16.mxu0 0
    %1240 = vmatmul.mubr.bf16.gmra.mrb[0].mxu0 %v1202
    %v1241 = vpop.f32.mrb[0].mxu0
    %v1242 = vadd.f32 %v351, %v1241
    %v1243 = vpop.f32.mrb[0].mxu0
    %v1244 = vpop.f32.mrb[0].mxu0
    %v1245 = vpop.f32.mrb[0].mxu0
    %1246 = vdwg.mxu0
    %1248 = vrot.lane.b32.xlu0 %v1197, 96
    %v1249 = vpop.permute.xlu0 %1248
    %v1251 = vsel %vm361, %v1197, 0
    %v1254 = vsel %vm361, %v1249, 0
    %1256 = vmatprep.subr.bf16.mxu0 0
    %1257 = vmatpush1.bf16.xpose.msra.mxu0 %v1254
    %1258 = vmatprep.subr.bf16.mxu0 0
    %1259 = vmatpush1.bf16.xpose.msra.mxu0 0
    %1260 = vmatprep.subr.bf16.mxu0 0
    %1261 = vmatpush1.bf16.xpose.msra.mxu0 0
    %1262 = vmatprep.subr.bf16.mxu0 0
    %1263 = vmatpush1.bf16.xpose.msra.mxu0 0
    %1264 = vmatprep.subr.bf16.mxu0 0
    %1265 = vmatpush1.bf16.xpose.msra.mxu0 0
    %1266 = vmatprep.subr.bf16.mxu0 0
    %1267 = vmatpush1.bf16.xpose.msra.mxu0 0
    %1268 = vmatprep.subr.bf16.mxu0 0
    %1269 = vmatpush1.bf16.xpose.msra.mxu0 0
    %1270 = vmatprep.subr.bf16.mxu0 0
    %1271 = vmatpush1.bf16.xpose.msra.mxu0 0
    %1272 = vmatprep.subr.bf16.mxu0 0
    %1273 = vmatpush1.bf16.xpose.msra.mxu0 0
    %1274 = vmatprep.subr.bf16.mxu0 0
    %1275 = vmatpush1.bf16.xpose.msra.mxu0 0
    %1276 = vmatprep.subr.bf16.mxu0 0
    %1277 = vmatpush1.bf16.xpose.msra.mxu0 0
    %1278 = vmatprep.subr.bf16.mxu0 0
    %1279 = vmatpush1.bf16.xpose.msra.mxu0 0
    %1280 = vmatprep.subr.bf16.mxu0 0
    %1281 = vmatpush1.bf16.xpose.msra.mxu0 0
    %1282 = vmatprep.subr.bf16.mxu0 0
    %1283 = vmatpush1.bf16.xpose.msra.mxu0 0
    %1284 = vmatprep.subr.bf16.mxu0 0
    %1285 = vmatpush1.bf16.xpose.msra.mxu0 0
    %1286 = vmatprep.subr.bf16.mxu0 0
    %1287 = vmatpush1.bf16.xpose.msra.mxu0 0
    %1288 = vmatprep.mubr.bf16.mxu0 0
    %1289 = vmatmul.mubr.bf16.gmra.mrb[0].mxu0 %v1251
    %v1290 = vpop.f32.mrb[0].mxu0
    %v1291 = vadd.f32 %v355, %v1290
    %v1292 = vpop.f32.mrb[0].mxu0
    %v1293 = vpop.f32.mrb[0].mxu0
    %v1294 = vpop.f32.mrb[0].mxu0
    %1295 = vdwg.mxu0
    %v1296 = vsel %vm457, %v1242, -inf
    %1297 = vmax.xlane.f32.xlu0 %v1296
    %v1298 = vpop.xlane.xlu0 %1297
    %v1299 = vsel %vm457, %v1291, -inf
    %1300 = vmax.xlane.f32.xlu0 %v1299
    %v1301 = vpop.xlane.xlu0 %1300
    %v1302 = vsub.f32 %v1242, %v1298
    %v1303 = vsub.f32 %v1291, %v1301
    %v1304 = vmul.f32 %v1302, 1.442695
    %v1305 = vpow.pop %v1304
    %v1306 = vmul.f32 %v1303, 1.442695
    %v1307 = vpow.pop %v1306
    %v1308 = vsel %vm457, %v1305, 0.0
    %1309 = vadd.xlane.f32.xlu0 %v1308
    %v1310 = vpop.xlane.xlu0 %1309
    %v1311 = vsel %vm457, %v1307, 0.0
    %1312 = vadd.xlane.f32.xlu0 %v1311
    %v1313 = vpop.xlane.xlu0 %1312
    %v1314 = vrcp.pop %v1310
    %v1315 = vmul.f32 %v1305, %v1314
    %v1316 = vrcp.pop %v1313
    %v1317 = vmul.f32 %v1307, %v1316
    %v1318 = vpack.c.bf16 %v1315, %v1315
    %v1319 = vpack.c.bf16 %v1317, %v1317
    %1320 = vrot.lane.b32.xlu0 %v1196, 64
    %v1321 = vpop.permute.xlu0 %1320
    %v1323 = vsel %vm457, %v1318, 0
    %v1326 = vsel %vm487, %v1321, 0
    %1328 = vmatprep.subr.bf16.mxu0 0
    %1329 = vmatpush1.bf16.msra.mxu0 %v1326
    %1330 = vmatprep.subr.bf16.mxu0 0
    %1331 = vmatpush1.bf16.msra.mxu0 0
    %1332 = vmatprep.subr.bf16.mxu0 0
    %1333 = vmatpush1.bf16.msra.mxu0 0
    %1334 = vmatprep.subr.bf16.mxu0 0
    %1335 = vmatpush1.bf16.msra.mxu0 0
    %1336 = vmatprep.subr.bf16.mxu0 0
    %1337 = vmatpush1.bf16.msra.mxu0 0
    %1338 = vmatprep.subr.bf16.mxu0 0
    %1339 = vmatpush1.bf16.msra.mxu0 0
    %1340 = vmatprep.subr.bf16.mxu0 0
    %1341 = vmatpush1.bf16.msra.mxu0 0
    %1342 = vmatprep.subr.bf16.mxu0 0
    %1343 = vmatpush1.bf16.msra.mxu0 0
    %1344 = vmatprep.subr.bf16.mxu0 0
    %1345 = vmatpush1.bf16.msra.mxu0 0
    %1346 = vmatprep.subr.bf16.mxu0 0
    %1347 = vmatpush1.bf16.msra.mxu0 0
    %1348 = vmatprep.subr.bf16.mxu0 0
    %1349 = vmatpush1.bf16.msra.mxu0 0
    %1350 = vmatprep.subr.bf16.mxu0 0
    %1351 = vmatpush1.bf16.msra.mxu0 0
    %1352 = vmatprep.subr.bf16.mxu0 0
    %1353 = vmatpush1.bf16.msra.mxu0 0
    %1354 = vmatprep.subr.bf16.mxu0 0
    %1355 = vmatpush1.bf16.msra.mxu0 0
    %1356 = vmatprep.subr.bf16.mxu0 0
    %1357 = vmatpush1.bf16.msra.mxu0 0
    %1358 = vmatprep.subr.bf16.mxu0 0
    %1359 = vmatpush1.bf16.msra.mxu0 0
    %1360 = vmatprep.mubr.bf16.mxu0 0
    %1361 = vmatmul.mubr.bf16.gmra.mrb[0].mxu0 %v1323
    %v1362 = vpop.f32.mrb[0].mxu0
    %v1363 = vadd.f32 0.0, %v1362
    %v1364 = vpop.f32.mrb[0].mxu0
    %v1365 = vpop.f32.mrb[0].mxu0
    %v1366 = vpop.f32.mrb[0].mxu0
    %1367 = vdwg.mxu0
    %1368 = vrot.lane.b32.xlu0 %v1197, 64
    %v1369 = vpop.permute.xlu0 %1368
    %v1371 = vsel %vm457, %v1319, 0
    %v1374 = vsel %vm487, %v1369, 0
    %1376 = vmatprep.subr.bf16.mxu0 0
    %1377 = vmatpush1.bf16.msra.mxu0 %v1374
    %1378 = vmatprep.subr.bf16.mxu0 0
    %1379 = vmatpush1.bf16.msra.mxu0 0
    %1380 = vmatprep.subr.bf16.mxu0 0
    %1381 = vmatpush1.bf16.msra.mxu0 0
    %1382 = vmatprep.subr.bf16.mxu0 0
    %1383 = vmatpush1.bf16.msra.mxu0 0
    %1384 = vmatprep.subr.bf16.mxu0 0
    %1385 = vmatpush1.bf16.msra.mxu0 0
    %1386 = vmatprep.subr.bf16.mxu0 0
    %1387 = vmatpush1.bf16.msra.mxu0 0
    %1388 = vmatprep.subr.bf16.mxu0 0
    %1389 = vmatpush1.bf16.msra.mxu0 0
    %1390 = vmatprep.subr.bf16.mxu0 0
    %1391 = vmatpush1.bf16.msra.mxu0 0
    %1392 = vmatprep.subr.bf16.mxu0 0
    %1393 = vmatpush1.bf16.msra.mxu0 0
    %1394 = vmatprep.subr.bf16.mxu0 0
    %1395 = vmatpush1.bf16.msra.mxu0 0
    %1396 = vmatprep.subr.bf16.mxu0 0
    %1397 = vmatpush1.bf16.msra.mxu0 0
    %1398 = vmatprep.subr.bf16.mxu0 0
    %1399 = vmatpush1.bf16.msra.mxu0 0
    %1400 = vmatprep.subr.bf16.mxu0 0
    %1401 = vmatpush1.bf16.msra.mxu0 0
    %1402 = vmatprep.subr.bf16.mxu0 0
    %1403 = vmatpush1.bf16.msra.mxu0 0
    %1404 = vmatprep.subr.bf16.mxu0 0
    %1405 = vmatpush1.bf16.msra.mxu0 0
    %1406 = vmatprep.subr.bf16.mxu0 0
    %1407 = vmatpush1.bf16.msra.mxu0 0
    %1408 = vmatprep.mubr.bf16.mxu0 0
    %1409 = vmatmul.mubr.bf16.gmra.mrb[0].mxu0 %v1371
    %v1410 = vpop.f32.mrb[0].mxu0
    %v1411 = vadd.f32 0.0, %v1410
    %v1412 = vpop.f32.mrb[0].mxu0
    %v1413 = vpop.f32.mrb[0].mxu0
    %v1414 = vpop.f32.mrb[0].mxu0
    %1415 = vdwg.mxu0
    %1416 = vrot.lane.b32.xlu0 %v1196, 112
    %v1417 = vpop.permute.xlu0 %1416
    %1418 = vrot.lane.b32.xlu0 %v1196, 80
    %v1419 = vpop.permute.xlu0 %1418
    %v1421 = vsel %vm361, %v1417, 0
    %v1424 = vsel %vm361, %v1419, 0
    %1426 = vmatprep.subr.bf16.mxu0 0
    %1427 = vmatpush1.bf16.xpose.msra.mxu0 %v1424
    %1428 = vmatprep.subr.bf16.mxu0 0
    %1429 = vmatpush1.bf16.xpose.msra.mxu0 0
    %1430 = vmatprep.subr.bf16.mxu0 0
    %1431 = vmatpush1.bf16.xpose.msra.mxu0 0
    %1432 = vmatprep.subr.bf16.mxu0 0
    %1433 = vmatpush1.bf16.xpose.msra.mxu0 0
    %1434 = vmatprep.subr.bf16.mxu0 0
    %1435 = vmatpush1.bf16.xpose.msra.mxu0 0
    %1436 = vmatprep.subr.bf16.mxu0 0
    %1437 = vmatpush1.bf16.xpose.msra.mxu0 0
    %1438 = vmatprep.subr.bf16.mxu0 0
    %1439 = vmatpush1.bf16.xpose.msra.mxu0 0
    %1440 = vmatprep.subr.bf16.mxu0 0
    %1441 = vmatpush1.bf16.xpose.msra.mxu0 0
    %1442 = vmatprep.subr.bf16.mxu0 0
    %1443 = vmatpush1.bf16.xpose.msra.mxu0 0
    %1444 = vmatprep.subr.bf16.mxu0 0
    %1445 = vmatpush1.bf16.xpose.msra.mxu0 0
    %1446 = vmatprep.subr.bf16.mxu0 0
    %1447 = vmatpush1.bf16.xpose.msra.mxu0 0
    %1448 = vmatprep.subr.bf16.mxu0 0
    %1449 = vmatpush1.bf16.xpose.msra.mxu0 0
    %1450 = vmatprep.subr.bf16.mxu0 0
    %1451 = vmatpush1.bf16.xpose.msra.mxu0 0
    %1452 = vmatprep.subr.bf16.mxu0 0
    %1453 = vmatpush1.bf16.xpose.msra.mxu0 0
    %1454 = vmatprep.subr.bf16.mxu0 0
    %1455 = vmatpush1.bf16.xpose.msra.mxu0 0
    %1456 = vmatprep.subr.bf16.mxu0 0
    %1457 = vmatpush1.bf16.xpose.msra.mxu0 0
    %1458 = vmatprep.mubr.bf16.mxu0 0
    %1459 = vmatmul.mubr.bf16.gmra.mrb[0].mxu0 %v1421
    %v1460 = vpop.f32.mrb[0].mxu0
    %v1461 = vadd.f32 %v351, %v1460
    %v1462 = vpop.f32.mrb[0].mxu0
    %v1463 = vpop.f32.mrb[0].mxu0
    %v1464 = vpop.f32.mrb[0].mxu0
    %1465 = vdwg.mxu0
    %1466 = vrot.lane.b32.xlu0 %v1197, 112
    %v1467 = vpop.permute.xlu0 %1466
    %1468 = vrot.lane.b32.xlu0 %v1197, 80
    %v1469 = vpop.permute.xlu0 %1468
    %v1471 = vsel %vm361, %v1467, 0
    %v1474 = vsel %vm361, %v1469, 0
    %1476 = vmatprep.subr.bf16.mxu0 0
    %1477 = vmatpush1.bf16.xpose.msra.mxu0 %v1474
    %1478 = vmatprep.subr.bf16.mxu0 0
    %1479 = vmatpush1.bf16.xpose.msra.mxu0 0
    %1480 = vmatprep.subr.bf16.mxu0 0
    %1481 = vmatpush1.bf16.xpose.msra.mxu0 0
    %1482 = vmatprep.subr.bf16.mxu0 0
    %1483 = vmatpush1.bf16.xpose.msra.mxu0 0
    %1484 = vmatprep.subr.bf16.mxu0 0
    %1485 = vmatpush1.bf16.xpose.msra.mxu0 0
    %1486 = vmatprep.subr.bf16.mxu0 0
    %1487 = vmatpush1.bf16.xpose.msra.mxu0 0
    %1488 = vmatprep.subr.bf16.mxu0 0
    %1489 = vmatpush1.bf16.xpose.msra.mxu0 0
    %1490 = vmatprep.subr.bf16.mxu0 0
    %1491 = vmatpush1.bf16.xpose.msra.mxu0 0
    %1492 = vmatprep.subr.bf16.mxu0 0
    %1493 = vmatpush1.bf16.xpose.msra.mxu0 0
    %1494 = vmatprep.subr.bf16.mxu0 0
    %1495 = vmatpush1.bf16.xpose.msra.mxu0 0
    %1496 = vmatprep.subr.bf16.mxu0 0
    %1497 = vmatpush1.bf16.xpose.msra.mxu0 0
    %1498 = vmatprep.subr.bf16.mxu0 0
    %1499 = vmatpush1.bf16.xpose.msra.mxu0 0
    %1500 = vmatprep.subr.bf16.mxu0 0
    %1501 = vmatpush1.bf16.xpose.msra.mxu0 0
    %1502 = vmatprep.subr.bf16.mxu0 0
    %1503 = vmatpush1.bf16.xpose.msra.mxu0 0
    %1504 = vmatprep.subr.bf16.mxu0 0
    %1505 = vmatpush1.bf16.xpose.msra.mxu0 0
    %1506 = vmatprep.subr.bf16.mxu0 0
    %1507 = vmatpush1.bf16.xpose.msra.mxu0 0
    %1508 = vmatprep.mubr.bf16.mxu0 0
    %1509 = vmatmul.mubr.bf16.gmra.mrb[0].mxu0 %v1471
    %v1510 = vpop.f32.mrb[0].mxu0
    %v1511 = vadd.f32 %v355, %v1510
    %v1512 = vpop.f32.mrb[0].mxu0
    %v1513 = vpop.f32.mrb[0].mxu0
    %v1514 = vpop.f32.mrb[0].mxu0
    %1515 = vdwg.mxu0
    %v1516 = vsel %vm457, %v1461, -inf
    %1517 = vmax.xlane.f32.xlu0 %v1516
    %v1518 = vpop.xlane.xlu0 %1517
    %v1519 = vsel %vm457, %v1511, -inf
    %1520 = vmax.xlane.f32.xlu0 %v1519
    %v1521 = vpop.xlane.xlu0 %1520
    %v1522 = vsub.f32 %v1461, %v1518
    %v1523 = vsub.f32 %v1511, %v1521
    %v1524 = vmul.f32 %v1522, 1.442695
    %v1525 = vpow.pop %v1524
    %v1526 = vmul.f32 %v1523, 1.442695
    %v1527 = vpow.pop %v1526
    %v1528 = vsel %vm457, %v1525, 0.0
    %1529 = vadd.xlane.f32.xlu0 %v1528
    %v1530 = vpop.xlane.xlu0 %1529
    %v1531 = vsel %vm457, %v1527, 0.0
    %1532 = vadd.xlane.f32.xlu0 %v1531
    %v1533 = vpop.xlane.xlu0 %1532
    %v1534 = vrcp.pop %v1530
    %v1535 = vmul.f32 %v1525, %v1534
    %v1536 = vrcp.pop %v1533
    %v1537 = vmul.f32 %v1527, %v1536
    %v1538 = vpack.c.bf16 %v1535, %v1535
    %v1539 = vpack.c.bf16 %v1537, %v1537
    %1540 = vrot.lane.b32.xlu0 %v1196, 48
    %v1541 = vpop.permute.xlu0 %1540
    %v1543 = vsel %vm457, %v1538, 0
    %v1546 = vsel %vm487, %v1541, 0
    %1548 = vmatprep.subr.bf16.mxu0 0
    %1549 = vmatpush1.bf16.msra.mxu0 %v1546
    %1550 = vmatprep.subr.bf16.mxu0 0
    %1551 = vmatpush1.bf16.msra.mxu0 0
    %1552 = vmatprep.subr.bf16.mxu0 0
    %1553 = vmatpush1.bf16.msra.mxu0 0
    %1554 = vmatprep.subr.bf16.mxu0 0
    %1555 = vmatpush1.bf16.msra.mxu0 0
    %1556 = vmatprep.subr.bf16.mxu0 0
    %1557 = vmatpush1.bf16.msra.mxu0 0
    %1558 = vmatprep.subr.bf16.mxu0 0
    %1559 = vmatpush1.bf16.msra.mxu0 0
    %1560 = vmatprep.subr.bf16.mxu0 0
    %1561 = vmatpush1.bf16.msra.mxu0 0
    %1562 = vmatprep.subr.bf16.mxu0 0
    %1563 = vmatpush1.bf16.msra.mxu0 0
    %1564 = vmatprep.subr.bf16.mxu0 0
    %1565 = vmatpush1.bf16.msra.mxu0 0
    %1566 = vmatprep.subr.bf16.mxu0 0
    %1567 = vmatpush1.bf16.msra.mxu0 0
    %1568 = vmatprep.subr.bf16.mxu0 0
    %1569 = vmatpush1.bf16.msra.mxu0 0
    %1570 = vmatprep.subr.bf16.mxu0 0
    %1571 = vmatpush1.bf16.msra.mxu0 0
    %1572 = vmatprep.subr.bf16.mxu0 0
    %1573 = vmatpush1.bf16.msra.mxu0 0
    %1574 = vmatprep.subr.bf16.mxu0 0
    %1575 = vmatpush1.bf16.msra.mxu0 0
    %1576 = vmatprep.subr.bf16.mxu0 0
    %1577 = vmatpush1.bf16.msra.mxu0 0
    %1578 = vmatprep.subr.bf16.mxu0 0
    %1579 = vmatpush1.bf16.msra.mxu0 0
    %1580 = vmatprep.mubr.bf16.mxu0 0
    %1581 = vmatmul.mubr.bf16.gmra.mrb[0].mxu0 %v1543
    %v1582 = vpop.f32.mrb[0].mxu0
    %v1583 = vadd.f32 0.0, %v1582
    %v1584 = vpop.f32.mrb[0].mxu0
    %v1585 = vpop.f32.mrb[0].mxu0
    %v1586 = vpop.f32.mrb[0].mxu0
    %1587 = vdwg.mxu0
    %1588 = vrot.lane.b32.xlu0 %v1197, 48
    %v1589 = vpop.permute.xlu0 %1588
    %v1591 = vsel %vm457, %v1539, 0
    %v1594 = vsel %vm487, %v1589, 0
    %1596 = vmatprep.subr.bf16.mxu0 0
    %1597 = vmatpush1.bf16.msra.mxu0 %v1594
    %1598 = vmatprep.subr.bf16.mxu0 0
    %1599 = vmatpush1.bf16.msra.mxu0 0
    %1600 = vmatprep.subr.bf16.mxu0 0
    %1601 = vmatpush1.bf16.msra.mxu0 0
    %1602 = vmatprep.subr.bf16.mxu0 0
    %1603 = vmatpush1.bf16.msra.mxu0 0
    %1604 = vmatprep.subr.bf16.mxu0 0
    %1605 = vmatpush1.bf16.msra.mxu0 0
    %1606 = vmatprep.subr.bf16.mxu0 0
    %1607 = vmatpush1.bf16.msra.mxu0 0
    %1608 = vmatprep.subr.bf16.mxu0 0
    %1609 = vmatpush1.bf16.msra.mxu0 0
    %1610 = vmatprep.subr.bf16.mxu0 0
    %1611 = vmatpush1.bf16.msra.mxu0 0
    %1612 = vmatprep.subr.bf16.mxu0 0
    %1613 = vmatpush1.bf16.msra.mxu0 0
    %1614 = vmatprep.subr.bf16.mxu0 0
    %1615 = vmatpush1.bf16.msra.mxu0 0
    %1616 = vmatprep.subr.bf16.mxu0 0
    %1617 = vmatpush1.bf16.msra.mxu0 0
    %1618 = vmatprep.subr.bf16.mxu0 0
    %1619 = vmatpush1.bf16.msra.mxu0 0
    %1620 = vmatprep.subr.bf16.mxu0 0
    %1621 = vmatpush1.bf16.msra.mxu0 0
    %1622 = vmatprep.subr.bf16.mxu0 0
    %1623 = vmatpush1.bf16.msra.mxu0 0
    %1624 = vmatprep.subr.bf16.mxu0 0
    %1625 = vmatpush1.bf16.msra.mxu0 0
    %1626 = vmatprep.subr.bf16.mxu0 0
    %1627 = vmatpush1.bf16.msra.mxu0 0
    %1628 = vmatprep.mubr.bf16.mxu0 0
    %1629 = vmatmul.mubr.bf16.gmra.mrb[0].mxu0 %v1591
    %v1630 = vpop.f32.mrb[0].mxu0
    %v1631 = vadd.f32 0.0, %v1630
    %v1632 = vpop.f32.mrb[0].mxu0
    %v1633 = vpop.f32.mrb[0].mxu0
    %v1634 = vpop.f32.mrb[0].mxu0
    %1635 = vdwg.mxu0
    %1638 = vrot.lane.b32.xlu0 %v1583, 16
    %v1639 = vpop.permute.xlu0 %1638
    %1640 = vrot.lane.b32.xlu0 %v1631, 16
    %v1641 = vpop.permute.xlu0 %1640
    %v1644 = vsel %vm361, %v1363, %v1639
    %v1645 = vsel %vm361, %v1411, %v1641
    %s1646 = scalar_lea.vmem [#allocation5], 384
    %v1647 = vld [vmem:[%s1646] sm:$0xf]
    %v1648 = vld [vmem:[%s1646 + $0x4] sm:$0xf]
    %v1649 = vld [vmem:[%s1646 + $0x8] sm:$0xf]
    %v1650 = vld [vmem:[%s1646 + $0xc] sm:$0xf]
    %v1651 = vpack.c.bf16 %v1645, %v1644
    %v1652 = vld [vmem:[#allocation7 + $0x1d] sm:$0x1]
    %v1653 = vlaneseq
    %v1654 = vshrl.u32 %v1653, 7
    %v1655 = vsub.s32 0, %v1654
    %v1656 = vrot.slane %v1652, %v1655
    %v1661 = vunpack.c.l.b16 %v1647
    %v1662 = vunpack.c.l.b16 %v1648
    %v1663 = vunpack.c.l.b16 %v1649
    %v1664 = vunpack.c.l.b16 %v1650
    %v1665 = vpack.c.b16 %v1662, %v1661
    %v1666 = vpack.c.b16 %v1664, %v1663
    %v1670 = vsel %vm214, %v1651, 0
    %1672 = vmatprep.subr.bf16.mxu0 0
    %1673 = vmatpush1.bf16.msra.mxu0 %v1665
    %1674 = vmatprep.subr.bf16.mxu0 0
    %1675 = vmatpush1.bf16.msra.mxu0 %v1666
    %1676 = vmatprep.subr.bf16.mxu0 0
    %1677 = vmatpush1.bf16.msra.mxu0 0
    %1678 = vmatprep.subr.bf16.mxu0 0
    %1679 = vmatpush1.bf16.msra.mxu0 0
    %1680 = vmatprep.subr.bf16.mxu0 0
    %1681 = vmatpush1.bf16.msra.mxu0 0
    %1682 = vmatprep.subr.bf16.mxu0 0
    %1683 = vmatpush1.bf16.msra.mxu0 0
    %1684 = vmatprep.subr.bf16.mxu0 0
    %1685 = vmatpush1.bf16.msra.mxu0 0
    %1686 = vmatprep.subr.bf16.mxu0 0
    %1687 = vmatpush1.bf16.msra.mxu0 0
    %1688 = vmatprep.subr.bf16.mxu0 0
    %1689 = vmatpush1.bf16.msra.mxu0 0
    %1690 = vmatprep.subr.bf16.mxu0 0
    %1691 = vmatpush1.bf16.msra.mxu0 0
    %1692 = vmatprep.subr.bf16.mxu0 0
    %1693 = vmatpush1.bf16.msra.mxu0 0
    %1694 = vmatprep.subr.bf16.mxu0 0
    %1695 = vmatpush1.bf16.msra.mxu0 0
    %1696 = vmatprep.subr.bf16.mxu0 0
    %1697 = vmatpush1.bf16.msra.mxu0 0
    %1698 = vmatprep.subr.bf16.mxu0 0
    %1699 = vmatpush1.bf16.msra.mxu0 0
    %1700 = vmatprep.subr.bf16.mxu0 0
    %1701 = vmatpush1.bf16.msra.mxu0 0
    %1702 = vmatprep.subr.bf16.mxu0 0
    %1703 = vmatpush1.bf16.msra.mxu0 0
    %1704 = vmatprep.mubr.bf16.mxu0 0
    %1705 = vmatmul.mubr.bf16.gmra.mrb[0].mxu0 %v1670
    %v1706 = vpop.f32.mrb[0].mxu0
    %v1707 = vadd.f32 %v1656, %v1706
    %v1708 = vpop.f32.mrb[0].mxu0
    %v1709 = vpop.f32.mrb[0].mxu0
    %v1710 = vadd.f32 %v1656, %v1709
    %v1711 = vpop.f32.mrb[0].mxu0
    %1712 = vdwg.mxu0
    %v1713 = vadd.f32 %v1707, %v1127
    %v1714 = vadd.f32 %v1710, %v1128
    %v1715 = vld [vmem:[#allocation7 + $0x1e] sm:$0x1]
    %v1716 = vld [vmem:[#allocation7 + $0x1f] sm:$0x1]
    %v1717 = vsel %vm214, %v1713, 0.0
    %1718 = vadd.xlane.f32.xlu0 %v1717
    %v1719 = vpop.xlane.xlu0 %1718
    %v1720 = vsel %vm214, %v1714, 0.0
    %1721 = vadd.xlane.f32.xlu0 %v1720
    %v1722 = vpop.xlane.xlu0 %1721
    %v1723 = vmul.f32 %v1719, %v221
    %v1724 = vmul.f32 %v1722, %v221
    %v1725 = vsub.f32 %v1713, %v1723
    %v1726 = vsub.f32 %v1714, %v1724
    %v1727 = vmul.f32 %v1725, %v1725
    %v1728 = vmul.f32 %v1726, %v1726
    %v1729 = vsel %vm214, %v1727, 0.0
    %1730 = vadd.xlane.f32.xlu0 %v1729
    %v1731 = vpop.xlane.xlu0 %1730
    %v1732 = vsel %vm214, %v1728, 0.0
    %1733 = vadd.xlane.f32.xlu0 %v1732
    %v1734 = vpop.xlane.xlu0 %1733
    %v1735 = vmul.f32 %v1731, %v221
    %v1736 = vmul.f32 %v1734, %v221
    %v1737 = vadd.f32 %v1735, 1e-12
    %v1738 = vadd.f32 %v1736, 1e-12
    %v1739 = vrsqrt.pop %v1737
    %v1740 = vrsqrt.pop %v1738
    %v1741 = vmul.f32 %v1725, %v1739
    %v1742 = vmul.f32 %v1726, %v1740
    %v1743 = vlaneseq
    %v1744 = vshrl.u32 %v1743, 7
    %v1745 = vsub.s32 0, %v1744
    %v1746 = vrot.slane %v1715, %v1745
    %v1747 = vmul.f32 %v1741, %v1746
    %v1748 = vmul.f32 %v1742, %v1746
    %v1749 = vlaneseq
    %v1750 = vshrl.u32 %v1749, 7
    %v1751 = vsub.s32 0, %v1750
    %v1752 = vrot.slane %v1716, %v1751
    %v1753 = vadd.f32 %v1747, %v1752
    %v1754 = vadd.f32 %v1748, %v1752
    %s1755 = scalar_lea.vmem [#allocation5], 448
    %v1756 = vld [vmem:[%s1755] sm:$0xf]
    %v1757 = vld [vmem:[%s1755 + $0x4] sm:$0xf]
    %v1758 = vld [vmem:[%s1755 + $0x8] sm:$0xf]
    %v1759 = vld [vmem:[%s1755 + $0xc] sm:$0xf]
    %v1760 = vpack.c.bf16 %v1754, %v1753
    %v1761 = vld [vmem:[#allocation7 + $0x20] sm:$0x1]
    %v1762 = vlaneseq
    %v1763 = vshrl.u32 %v1762, 7
    %v1764 = vsub.s32 0, %v1763
    %v1765 = vrot.slane %v1761, %v1764
    %v1770 = vunpack.c.l.b16 %v1756
    %v1771 = vunpack.c.l.b16 %v1757
    %v1772 = vunpack.c.l.b16 %v1758
    %v1773 = vunpack.c.l.b16 %v1759
    %v1774 = vpack.c.b16 %v1771, %v1770
    %v1775 = vpack.c.b16 %v1773, %v1772
    %v1779 = vsel %vm214, %v1760, 0
    %1781 = vmatprep.subr.bf16.mxu0 0
    %1782 = vmatpush1.bf16.msra.mxu0 %v1774
    %1783 = vmatprep.subr.bf16.mxu0 0
    %1784 = vmatpush1.bf16.msra.mxu0 %v1775
    %1785 = vmatprep.subr.bf16.mxu0 0
    %1786 = vmatpush1.bf16.msra.mxu0 0
    %1787 = vmatprep.subr.bf16.mxu0 0
    %1788 = vmatpush1.bf16.msra.mxu0 0
    %1789 = vmatprep.subr.bf16.mxu0 0
    %1790 = vmatpush1.bf16.msra.mxu0 0
    %1791 = vmatprep.subr.bf16.mxu0 0
    %1792 = vmatpush1.bf16.msra.mxu0 0
    %1793 = vmatprep.subr.bf16.mxu0 0
    %1794 = vmatpush1.bf16.msra.mxu0 0
    %1795 = vmatprep.subr.bf16.mxu0 0
    %1796 = vmatpush1.bf16.msra.mxu0 0
    %1797 = vmatprep.subr.bf16.mxu0 0
    %1798 = vmatpush1.bf16.msra.mxu0 0
    %1799 = vmatprep.subr.bf16.mxu0 0
    %1800 = vmatpush1.bf16.msra.mxu0 0
    %1801 = vmatprep.subr.bf16.mxu0 0
    %1802 = vmatpush1.bf16.msra.mxu0 0
    %1803 = vmatprep.subr.bf16.mxu0 0
    %1804 = vmatpush1.bf16.msra.mxu0 0
    %1805 = vmatprep.subr.bf16.mxu0 0
    %1806 = vmatpush1.bf16.msra.mxu0 0
    %1807 = vmatprep.subr.bf16.mxu0 0
    %1808 = vmatpush1.bf16.msra.mxu0 0
    %1809 = vmatprep.subr.bf16.mxu0 0
    %1810 = vmatpush1.bf16.msra.mxu0 0
    %1811 = vmatprep.subr.bf16.mxu0 0
    %1812 = vmatpush1.bf16.msra.mxu0 0
    %1813 = vmatprep.mubr.bf16.mxu0 0
    %1814 = vmatmul.mubr.bf16.gmra.mrb[0].mxu0 %v1779
    %v1815 = vpop.f32.mrb[0].mxu0
    %v1816 = vadd.f32 %v1765, %v1815
    %v1817 = vpop.f32.mrb[0].mxu0
    %v1818 = vpop.f32.mrb[0].mxu0
    %v1819 = vadd.f32 %v1765, %v1818
    %v1820 = vpop.f32.mrb[0].mxu0
    %1821 = vdwg.mxu0
    %v1822 = vmul.f32 %v1816, %v1816
    %v1823 = vmul.f32 %v1819, %v1819
    %v1824 = vmul.f32 %v1816, %v1822
    %v1825 = vmul.f32 %v1819, %v1823
    %v1826 = vmul.f32 %v1824, 0.044715
    %v1827 = vmul.f32 %v1825, 0.044715
    %v1828 = vadd.f32 %v1816, %v1826
    %v1829 = vadd.f32 %v1819, %v1827
    %v1830 = vmul.f32 %v1828, 0.7978846
    %v1831 = vmul.f32 %v1829, 0.7978846
    %v1832 = vtanh.pop %v1830
    %v1833 = vtanh.pop %v1831
    %v1834 = vadd.f32 %v1832, 1.0
    %v1835 = vadd.f32 %v1833, 1.0
    %v1836 = vmul.f32 %v1834, 0.5
    %v1837 = vmul.f32 %v1835, 0.5
    %v1838 = vmul.f32 %v1816, %v1836
    %v1839 = vmul.f32 %v1819, %v1837
    %s1840 = scalar_lea.vmem [#allocation5], 512
    %v1841 = vld [vmem:[%s1840] sm:$0xf]
    %v1842 = vld [vmem:[%s1840 + $0x4] sm:$0xf]
    %v1843 = vld [vmem:[%s1840 + $0x8] sm:$0xf]
    %v1844 = vld [vmem:[%s1840 + $0xc] sm:$0xf]
    %v1845 = vld [vmem:[%s1840 + $0x10] sm:$0xf]
    %v1846 = vld [vmem:[%s1840 + $0x14] sm:$0xf]
    %v1847 = vld [vmem:[%s1840 + $0x18] sm:$0xf]
    %v1848 = vld [vmem:[%s1840 + $0x1c] sm:$0xf]
    %v1849 = vpack.c.bf16 %v1839, %v1838
    %v1850 = vld [vmem:[#allocation7 + $0x21] sm:$0x1]
    %v1851 = vlaneseq
    %v1852 = vshrl.u32 %v1851, 7
    %v1853 = vsub.s32 0, %v1852
    %v1854 = vrot.slane %v1850, %v1853
    %v1863 = vunpack.c.l.b16 %v1841
    %v1864 = vunpack.c.l.b16 %v1842
    %v1865 = vunpack.c.l.b16 %v1843
    %v1866 = vunpack.c.l.b16 %v1844
    %v1867 = vunpack.c.l.b16 %v1845
    %v1868 = vunpack.c.l.b16 %v1846
    %v1869 = vunpack.c.l.b16 %v1847
    %v1870 = vunpack.c.l.b16 %v1848
    %v1871 = vpack.c.b16 %v1864, %v1863
    %v1872 = vpack.c.b16 %v1866, %v1865
    %v1873 = vpack.c.b16 %v1868, %v1867
    %v1874 = vpack.c.b16 %v1870, %v1869
    %v1880 = vsel %vm1042, %v1849, 0
    %1882 = vmatprep.subr.bf16.mxu0 0
    %1883 = vmatpush1.bf16.msra.mxu0 %v1871
    %1884 = vmatprep.subr.bf16.mxu0 0
    %1885 = vmatpush1.bf16.msra.mxu0 %v1872
    %1886 = vmatprep.subr.bf16.mxu0 0
    %1887 = vmatpush1.bf16.msra.mxu0 %v1873
    %1888 = vmatprep.subr.bf16.mxu0 0
    %1889 = vmatpush1.bf16.msra.mxu0 %v1874
    %1890 = vmatprep.subr.bf16.mxu0 0
    %1891 = vmatpush1.bf16.msra.mxu0 0
    %1892 = vmatprep.subr.bf16.mxu0 0
    %1893 = vmatpush1.bf16.msra.mxu0 0
    %1894 = vmatprep.subr.bf16.mxu0 0
    %1895 = vmatpush1.bf16.msra.mxu0 0
    %1896 = vmatprep.subr.bf16.mxu0 0
    %1897 = vmatpush1.bf16.msra.mxu0 0
    %1898 = vmatprep.subr.bf16.mxu0 0
    %1899 = vmatpush1.bf16.msra.mxu0 0
    %1900 = vmatprep.subr.bf16.mxu0 0
    %1901 = vmatpush1.bf16.msra.mxu0 0
    %1902 = vmatprep.subr.bf16.mxu0 0
    %1903 = vmatpush1.bf16.msra.mxu0 0
    %1904 = vmatprep.subr.bf16.mxu0 0
    %1905 = vmatpush1.bf16.msra.mxu0 0
    %1906 = vmatprep.subr.bf16.mxu0 0
    %1907 = vmatpush1.bf16.msra.mxu0 0
    %1908 = vmatprep.subr.bf16.mxu0 0
    %1909 = vmatpush1.bf16.msra.mxu0 0
    %1910 = vmatprep.subr.bf16.mxu0 0
    %1911 = vmatpush1.bf16.msra.mxu0 0
    %1912 = vmatprep.subr.bf16.mxu0 0
    %1913 = vmatpush1.bf16.msra.mxu0 0
    %1914 = vmatprep.mubr.bf16.mxu0 0
    %1915 = vmatmul.mubr.bf16.gmra.mrb[0].mxu0 %v1880
    %v1916 = vpop.f32.mrb[0].mxu0
    %v1917 = vadd.f32 %v1854, %v1916
    %v1918 = vpop.f32.mrb[0].mxu0
    %v1919 = vpop.f32.mrb[0].mxu0
    %v1920 = vadd.f32 %v1854, %v1919
    %v1921 = vpop.f32.mrb[0].mxu0
    %1922 = vdwg.mxu0
    %v1923 = vadd.f32 %v1917, %v1753
    %v1924 = vadd.f32 %v1920, %v1754
    %v1925 = vld [vmem:[#allocation7 + $0x22] sm:$0x1]
    %v1926 = vld [vmem:[#allocation7 + $0x23] sm:$0x1]
    %v1927 = vsel %vm214, %v1923, 0.0
    %1928 = vadd.xlane.f32.xlu0 %v1927
    %v1929 = vpop.xlane.xlu0 %1928
    %v1930 = vsel %vm214, %v1924, 0.0
    %1931 = vadd.xlane.f32.xlu0 %v1930
    %v1932 = vpop.xlane.xlu0 %1931
    %v1933 = vmul.f32 %v1929, %v221
    %v1934 = vmul.f32 %v1932, %v221
    %v1935 = vsub.f32 %v1923, %v1933
    %v1936 = vsub.f32 %v1924, %v1934
    %v1937 = vmul.f32 %v1935, %v1935
    %v1938 = vmul.f32 %v1936, %v1936
    %v1939 = vsel %vm214, %v1937, 0.0
    %1940 = vadd.xlane.f32.xlu0 %v1939
    %v1941 = vpop.xlane.xlu0 %1940
    %v1942 = vsel %vm214, %v1938, 0.0
    %1943 = vadd.xlane.f32.xlu0 %v1942
    %v1944 = vpop.xlane.xlu0 %1943
    %v1945 = vmul.f32 %v1941, %v221
    %v1946 = vmul.f32 %v1944, %v221
    %v1947 = vadd.f32 %v1945, 1e-12
    %v1948 = vadd.f32 %v1946, 1e-12
    %v1949 = vrsqrt.pop %v1947
    %v1950 = vrsqrt.pop %v1948
    %v1951 = vmul.f32 %v1935, %v1949
    %v1952 = vmul.f32 %v1936, %v1950
    %v1953 = vlaneseq
    %v1954 = vshrl.u32 %v1953, 7
    %v1955 = vsub.s32 0, %v1954
    %v1956 = vrot.slane %v1925, %v1955
    %v1957 = vmul.f32 %v1951, %v1956
    %v1958 = vmul.f32 %v1952, %v1956
    %v1959 = vlaneseq
    %v1960 = vshrl.u32 %v1959, 7
    %v1961 = vsub.s32 0, %v1960
    %v1962 = vrot.slane %v1926, %v1961
    %v1963 = vadd.f32 %v1957, %v1962
    %v1964 = vadd.f32 %v1958, %v1962
    %s1965 = scalar_lea.vmem [#allocation5], 576
    %v1966 = vld [vmem:[%s1965] sm:$0xf]
    %v1967 = vld [vmem:[%s1965 + $0x4] sm:$0xf]
    %v1968 = vld [vmem:[%s1965 + $0x8] sm:$0xf]
    %v1969 = vld [vmem:[%s1965 + $0xc] sm:$0xf]
    %v1970 = vpack.c.bf16 %v1963, %v1963
    %v1971 = vpack.c.bf16 %v1964, %v1964
    %v1972 = vld [vmem:[#allocation7 + $0x24] sm:$0x1]
    %v1973 = vlaneseq
    %v1974 = vshrl.u32 %v1973, 7
    %v1975 = vsub.s32 0, %v1974
    %v1976 = vrot.slane %v1972, %v1975
    %v1979 = vunpack.c.l.b16 %v1970
    %v1980 = vunpack.c.l.b16 %v1971
    %v1981 = vrot.slane %v1980, 7
    %vm1982 = vcmask 1041409
    %v1983 = vsel %vm1982, %v1981, %v1979
    %v1984 = vpack.c.b16 %v1983, %v1983
    %v1989 = vunpack.c.l.b16 %v1966
    %v1990 = vunpack.c.l.b16 %v1967
    %v1991 = vunpack.c.l.b16 %v1968
    %v1992 = vunpack.c.l.b16 %v1969
    %v1993 = vpack.c.b16 %v1990, %v1989
    %v1994 = vpack.c.b16 %v1992, %v1991
    %v1998 = vsel %vm214, %v1984, 0
    %2000 = vmatprep.subr.bf16.mxu0 0
    %2001 = vmatpush1.bf16.msra.mxu0 %v1993
    %2002 = vmatprep.subr.bf16.mxu0 0
    %2003 = vmatpush1.bf16.msra.mxu0 %v1994
    %2004 = vmatprep.subr.bf16.mxu0 0
    %2005 = vmatpush1.bf16.msra.mxu0 0
    %2006 = vmatprep.subr.bf16.mxu0 0
    %2007 = vmatpush1.bf16.msra.mxu0 0
    %2008 = vmatprep.subr.bf16.mxu0 0
    %2009 = vmatpush1.bf16.msra.mxu0 0
    %2010 = vmatprep.subr.bf16.mxu0 0
    %2011 = vmatpush1.bf16.msra.mxu0 0
    %2012 = vmatprep.subr.bf16.mxu0 0
    %2013 = vmatpush1.bf16.msra.mxu0 0
    %2014 = vmatprep.subr.bf16.mxu0 0
    %2015 = vmatpush1.bf16.msra.mxu0 0
    %2016 = vmatprep.subr.bf16.mxu0 0
    %2017 = vmatpush1.bf16.msra.mxu0 0
    %2018 = vmatprep.subr.bf16.mxu0 0
    %2019 = vmatpush1.bf16.msra.mxu0 0
    %2020 = vmatprep.subr.bf16.mxu0 0
    %2021 = vmatpush1.bf16.msra.mxu0 0
    %2022 = vmatprep.subr.bf16.mxu0 0
    %2023 = vmatpush1.bf16.msra.mxu0 0
    %2024 = vmatprep.subr.bf16.mxu0 0
    %2025 = vmatpush1.bf16.msra.mxu0 0
    %2026 = vmatprep.subr.bf16.mxu0 0
    %2027 = vmatpush1.bf16.msra.mxu0 0
    %2028 = vmatprep.subr.bf16.mxu0 0
    %2029 = vmatpush1.bf16.msra.mxu0 0
    %2030 = vmatprep.subr.bf16.mxu0 0
    %2031 = vmatpush1.bf16.msra.mxu0 0
    %2032 = vmatprep.mubr.bf16.mxu0 0
    %2033 = vmatmul.mubr.bf16.gmra.mrb[0].mxu0 %v1998
    %v2034 = vpop.f32.mrb[0].mxu0
    %v2035 = vadd.f32 %v1976, %v2034
    %v2036 = vpop.f32.mrb[0].mxu0
    %v2037 = vpop.f32.mrb[0].mxu0
    %v2038 = vpop.f32.mrb[0].mxu0
    %2039 = vdwg.mxu0
    %v2040 = vtanh.pop %v2035
    %s2041 = scalar_lea.vmem [#allocation5], 640
    %v2042 = vld [vmem:[%s2041] sm:$0xf]
    %v2043 = vld [vmem:[%s2041 + $0x4] sm:$0xf]
    %v2044 = vld [vmem:[%s2041 + $0x8] sm:$0xf]
    %v2045 = vld [vmem:[%s2041 + $0xc] sm:$0xf]
    %v2046 = vpack.c.bf16 %v2040, %v2040
    %v2047 = vld [vmem:[#allocation7 + $0x25] sm:$0x1]
    %v2048 = vlaneseq
    %v2049 = vshrl.u32 %v2048, 7
    %v2050 = vsub.s32 0, %v2049
    %v2051 = vrot.slane %v2047, %v2050
    %v2056 = vunpack.c.l.b16 %v2042
    %v2057 = vunpack.c.l.b16 %v2043
    %v2058 = vunpack.c.l.b16 %v2044
    %v2059 = vunpack.c.l.b16 %v2045
    %v2060 = vpack.c.b16 %v2057, %v2056
    %v2061 = vpack.c.b16 %v2059, %v2058
    %v2065 = vsel %vm214, %v2046, 0
    %2067 = vmatprep.subr.bf16.mxu0 0
    %2068 = vmatpush1.bf16.msra.mxu0 %v2060
    %2069 = vmatprep.subr.bf16.mxu0 0
    %2070 = vmatpush1.bf16.msra.mxu0 %v2061
    %2071 = vmatprep.subr.bf16.mxu0 0
    %2072 = vmatpush1.bf16.msra.mxu0 0
    %2073 = vmatprep.subr.bf16.mxu0 0
    %2074 = vmatpush1.bf16.msra.mxu0 0
    %2075 = vmatprep.subr.bf16.mxu0 0
    %2076 = vmatpush1.bf16.msra.mxu0 0
    %2077 = vmatprep.subr.bf16.mxu0 0
    %2078 = vmatpush1.bf16.msra.mxu0 0
    %2079 = vmatprep.subr.bf16.mxu0 0
    %2080 = vmatpush1.bf16.msra.mxu0 0
    %2081 = vmatprep.subr.bf16.mxu0 0
    %2082 = vmatpush1.bf16.msra.mxu0 0
    %2083 = vmatprep.subr.bf16.mxu0 0
    %2084 = vmatpush1.bf16.msra.mxu0 0
    %2085 = vmatprep.subr.bf16.mxu0 0
    %2086 = vmatpush1.bf16.msra.mxu0 0
    %2087 = vmatprep.subr.bf16.mxu0 0
    %2088 = vmatpush1.bf16.msra.mxu0 0
    %2089 = vmatprep.subr.bf16.mxu0 0
    %2090 = vmatpush1.bf16.msra.mxu0 0
    %2091 = vmatprep.subr.bf16.mxu0 0
    %2092 = vmatpush1.bf16.msra.mxu0 0
    %2093 = vmatprep.subr.bf16.mxu0 0
    %2094 = vmatpush1.bf16.msra.mxu0 0
    %2095 = vmatprep.subr.bf16.mxu0 0
    %2096 = vmatpush1.bf16.msra.mxu0 0
    %2097 = vmatprep.subr.bf16.mxu0 0
    %2098 = vmatpush1.bf16.msra.mxu0 0
    %2099 = vmatprep.mubr.bf16.mxu0 0
    %2100 = vmatmul.mubr.bf16.gmra.mrb[0].mxu0 %v2065
    %v2101 = vpop.f32.mrb[0].mxu0
    %v2102 = vadd.f32 %v2051, %v2101
    %v2103 = vpop.f32.mrb[0].mxu0
    %v2104 = vpop.f32.mrb[0].mxu0
    %v2105 = vpop.f32.mrb[0].mxu0
    %2106 = vdwg.mxu0
    %v2107 = vmul.f32 %v2102, 0.5
    %v2108 = vround.ne.pseudo %v2107
    %v2109 = vadd.f32 %v2108, 16.0
    %v2110 = vmax.f32 %v2109, -16.0
    %v2111 = vmin.f32 %v2110, 15.0
    %vm2112 = vcmask 9216
    %v2113 = vsel %vm2112, %v2111, -inf
    %2114 = vmax.xlane.f32.xlu0 %v2113
    %v2115 = vpop.xlane.xlu0 %2114
    %v2116 = vsub.f32 %v2111, %v2115
    %v2117 = vmul.f32 %v2116, 1.442695
    %v2118 = vpow.pop %v2117
    %v2119 = vsel %vm2112, %v2118, 0.0
    %2120 = vadd.xlane.f32.xlu0 %v2119
    %v2121 = vpop.xlane.xlu0 %2120
    %v2122 = vlog2.pop %v2121
    %v2123 = vmul.f32 %v2122, 0.6931472
    %v2124 = vsub.f32 %v2116, %v2123
    %2125 = vset.pattern.permute.xlu0 0
    %2126 = vperm.xlu0 %2125, %v63
    %v2127 = vpop.permute.xlu0 %2126
    %vm2128 = vcmp.eq.s32.totalorder %v65, %v2127
    %v2129 = vsel %vm2128, 1, 0
    %v2130 = vcvt.s32.f32 %v2129
    %v2131 = vmul.f32 %v2124, %v2130
    %v2132 = vsel %vm2112, %v2131, 0.0
    %2133 = vadd.xlane.f32.xlu0 %v2132
    %v2134 = vpop.xlane.xlu0 %2133
    %v2135 = vsub.f32 0.0, %v2134
    %vm2136 = vcmask 1041408
    %v2137 = vsel %vm2136, %v2135, 0.0
    %v2138 = vrot.slane %v2137, 4
    %v2139 = vadd.f32 %v2137, %v2138
    %v2140 = vrot.slane %v2139, 2
    %v2141 = vadd.f32 %v2139, %v2140
    %v2142 = vrot.slane %v2141, 1
    %v2143 = vadd.f32 %v2141, %v2142
    %v2144 = vmul.f32 %v2143, 0.5
    %2145 = vst [vmem:[#allocation8] sm:$0xff] 0.0
    %2146 = vst.msk [vmem:[#allocation8] sm:$0x3] %vm2112, %v2111
    %vm2147 = vcmask 0
    %2148 = vst.msk [vmem:[#allocation8 + $0x2] sm:$0x1] %vm2147, %v2144
    // Predicated region
    $region26: #{tpu_custom_call.1} parent=1 // pred_check
      _
    $region27: #{tpu_custom_call.1} parent=1 // pred_check_branch
      %2150 = sbr.rel (0) target = $region29
    $region28: #{tpu_custom_call.1} parent=1 // pred_region
      %s2152 = ssub.s32 128, 128
      %2153 = vsyncadd [#allocation4], %s2152
      %s2155 = sshll.u32 [#allocation8], 4
      %s2156 = int_to_ptr.vmem [resolvable:$true] %s2155
      %2158 = dma.vmem_to_hbm [thread:$0]  %s2156, 128, %s3, [#allocation4]
    $region29: #{tpu_custom_call.1} parent=1 // pred_fallthru
      _
    // Predicated region
    $region30: #{tpu_custom_call.1} parent=1 // pred_check
      _
    $region31: #{tpu_custom_call.1} parent=1 // pred_check_branch
      %2160 = sbr.rel (0) target = $region33
    $region32: #{tpu_custom_call.1} parent=1 // pred_region
      %2161 = dma.done [#allocation4], 128
    $region33: #{tpu_custom_call.1} parent=1 // pred_fallthru
      _
    %2162 = vsyncpa [#allocation3], 1
    %2163 = vsyncpa [#allocation6], 1
    %2164 = vsyncpa [#allocation4], 1

</llo_original>
